<compile_context>
chip_gen: v6e
topology: v6e:2x2x1
jax: 0.10.0
libtpu: 0.0.40
codegen_flags: <defaults>
</compile_context>

<pallas_src>
import jax
import jax.numpy as jnp
from jax.experimental import pallas as pl
from jax.experimental.pallas import tpu as pltpu

# ----- sizes (ViT-B/32 config, scaled-down seq / classes / batch) -------------
B = 8          # batch
D_IN = 512     # img_emb_length for ViT-B/32
HID = 128      # cfg.clip.mlp_hiddenlayer_num
D_OUT = 512    # fc_output_dim
SEQ = 8        # prompt sequence length (small)
D_MODEL = 512  # transformer width
EMBED = 512    # text_projection output dim
N_CLS = 16     # number of classes

_VMEM = pl.BlockSpec(memory_space=pltpu.MemorySpace.VMEM)
_EPS = 1e-12


# ---------------------------------------------------------------------------
# Fused kernel: image MLP + L2 norm, text encoder tail + L2 norm, logits + CE
# ---------------------------------------------------------------------------
def custom_clip_kernel(img_ref, w1_ref, b1_ref, w2_ref, b2_ref,
                       tok_ref, pos_ref, gamma_ref, beta_ref, proj_ref, w_ref,
                       label_ref, ls_ref,
                       logits_ref, loss_ref):
    # ---- image path: Linear -> ReLU -> Linear -> L2 normalize (MXU, bf16) ----
    x = img_ref[...].astype(jnp.float32)                              # (B, D_IN)
    h = jnp.dot(x.astype(jnp.bfloat16), w1_ref[...],
                preferred_element_type=jnp.float32) + b1_ref[...]     # (B, HID)
    h = jnp.maximum(h, 0.0)                                           # ReLU (f32)
    y = jnp.dot(h.astype(jnp.bfloat16), w2_ref[...],
                preferred_element_type=jnp.float32) + b2_ref[...]     # (B, D_OUT)
    img_feat = y * jax.lax.rsqrt(
        jnp.sum(y * y, axis=-1, keepdims=True) + _EPS)                # (B, D_OUT)

    # ---- text path: (+pos emb), ln_final, @ text_projection, +w, L2 norm -----
    # EOT-token rows of prompts and positional_embedding are pre-gathered in
    # the wrapper (transformer treated as identity -> only 1 of SEQ tokens used).
    tok = tok_ref[...].astype(jnp.float32) + pos_ref[...].astype(jnp.float32)
    mu = jnp.mean(tok, axis=-1, keepdims=True)                        # LN in f32
    var = jnp.mean((tok - mu) ** 2, axis=-1, keepdims=True)
    tokn = (tok - mu) * jax.lax.rsqrt(var + 1e-5)
    tokn = tokn * gamma_ref[...] + beta_ref[...]                      # (C, D_MODEL)
    t = jnp.dot(tokn.astype(jnp.bfloat16), proj_ref[...],
                preferred_element_type=jnp.float32)                   # (C, EMBED)
    t = t + w_ref[...]                                                # text_correction
    txt_feat = t * jax.lax.rsqrt(
        jnp.sum(t * t, axis=-1, keepdims=True) + _EPS)                # (C, EMBED)

    # ---- logits + cross-entropy (f32) ----------------------------------------
    scale = jnp.exp(ls_ref[...])                                      # (1, 1)
    logits = scale * jax.lax.dot_general(
        img_feat.astype(jnp.bfloat16), txt_feat.astype(jnp.bfloat16),
        (((1,), (1,)), ((), ())),
        preferred_element_type=jnp.float32)                           # (B, C)
    logits_ref[...] = logits

    m = jnp.max(logits, axis=-1, keepdims=True)
    z = logits - m
    lse = jnp.log(jnp.sum(jnp.exp(z), axis=-1, keepdims=True))
    logp = z - lse
    bsz, ncls = logits.shape
    cls_ids = jax.lax.broadcasted_iota(jnp.int32, (bsz, ncls), 1)
    onehot = (cls_ids == label_ref[...]).astype(jnp.float32)          # label: (B,1)
    nll = -jnp.sum(onehot * logp, axis=-1, keepdims=True)             # (B, 1)
    loss_ref[...] = jnp.sum(nll, axis=0, keepdims=True) / bsz         # (1, 1)


def custom_clip_fused(image, w1, b1, w2, b2, tok_sel, pos_sel, gamma, beta,
                      proj, w, label2d, logit_scale):
    return pl.pallas_call(
        custom_clip_kernel,
        out_shape=(
            jax.ShapeDtypeStruct((B, N_CLS), jnp.float32),
            jax.ShapeDtypeStruct((1, 1), jnp.float32),
        ),
        in_specs=[_VMEM] * 13,
        out_specs=(_VMEM, _VMEM),
    )(image, w1, b1, w2, b2, tok_sel, pos_sel, gamma, beta, proj, w,
      label2d, logit_scale)


# ---------------------------------------------------------------------------
# CustomCLIP.forward (glue: index prep only; all compute in the fused kernel)
# ---------------------------------------------------------------------------
def custom_clip_forward(params, image, label, prompts, tokenized_prompts):
    # tokenized_prompts.argmax(-1) -> gather the single EOT row per class
    # (transformer is identity, so LN-then-select == select-then-LN).
    eot_idx = jnp.argmax(tokenized_prompts, axis=-1)                  # (C,)
    tok_sel = jnp.take_along_axis(
        prompts, eot_idx[:, None, None], axis=1)[:, 0, :]             # (C, D_MODEL)
    pos_sel = jnp.take(params["pos_emb"], eot_idx, axis=0)            # (C, D_MODEL)

    label2d = label.astype(jnp.int32).reshape(-1, 1)                  # (B, 1)

    logits, loss = custom_clip_fused(
        image.astype(jnp.float32),
        params["mlp_w1"], params["mlp_b1"], params["mlp_w2"], params["mlp_b2"],
        tok_sel, pos_sel, params["ln_gamma"], params["ln_beta"],
        params["text_proj"], params["w"], label2d, params["logit_scale"])

    return {"loss": loss[0, 0], "logits": logits}


# ---------------------------------------------------------------------------
def init_params(key):
    ks = jax.random.split(key, 8)
    return {
        # ClipModel_from_generated MLP (Linear stored as (in, out) for x @ W).
        # Matmul weights stored bf16 at rest; biases / LN / corrections in f32.
        "mlp_w1": (0.02 * jax.random.normal(ks[0], (D_IN, HID), jnp.float32)
                   ).astype(jnp.bfloat16),
        "mlp_b1": jnp.zeros((1, HID), jnp.float32),
        "mlp_w2": (0.02 * jax.random.normal(ks[1], (HID, D_OUT), jnp.float32)
                   ).astype(jnp.bfloat16),
        "mlp_b2": jnp.zeros((1, D_OUT), jnp.float32),
        # TextEncoder pieces
        "pos_emb": 0.01 * jax.random.normal(ks[2], (SEQ, D_MODEL), jnp.float32),
        "ln_gamma": jnp.ones((1, D_MODEL), jnp.float32),
        "ln_beta": jnp.zeros((1, D_MODEL), jnp.float32),
        "text_proj": (0.02 * jax.random.normal(ks[3], (D_MODEL, EMBED),
                                               jnp.float32)).astype(jnp.bfloat16),
        # PromptLearner.w (text correction term)
        "w": 0.01 * jax.random.normal(ks[4], (1, EMBED), jnp.float32),
        # CLIP logit_scale (log(1/0.07)), stored as (1,1)
        "logit_scale": jnp.full((1, 1), jnp.log(1.0 / 0.07), jnp.float32),
    }


if __name__ == "__main__":
    key = jax.random.PRNGKey(0)
    kp, ki, kpr, kl = jax.random.split(key, 4)

    params = init_params(kp)

    # "image" here is the image embedding fed to ClipModel_from_generated
    image = jax.random.normal(ki, (B, D_IN), jnp.float32)
    prompts = jax.random.normal(kpr, (N_CLS, SEQ, D_MODEL), jnp.float32)
    # tokenized prompts: EOT token (max id) at a deterministic position per class
    eot_pos = jnp.arange(N_CLS) % SEQ
    tokenized_prompts = jnp.where(
        jax.nn.one_hot(eot_pos, SEQ, dtype=jnp.int32) > 0, 49407,
        jnp.ones((N_CLS, SEQ), jnp.int32))
    label = jax.random.randint(kl, (B,), 0, N_CLS, jnp.int32)

    fwd = jax.jit(custom_clip_forward)
    out = fwd(params, image, label, prompts, tokenized_prompts)
    jax.block_until_ready(out)

    assert out["logits"].shape == (B, N_CLS)
    assert out["loss"].shape == ()
    assert bool(jnp.isfinite(out["loss"]))
    print("KERNEL_OK")
</pallas_src>

<mosaic_0001>
module attributes {stable_mosaic.version = 11 : i64} {
  func.func @custom_clip_kernel(%arg0: memref<8x512xf32, #tpu.memory_space<vmem>>, %arg1: memref<512x128xbf16, #tpu.memory_space<vmem>>, %arg2: memref<1x128xf32, #tpu.memory_space<vmem>>, %arg3: memref<128x512xbf16, #tpu.memory_space<vmem>>, %arg4: memref<1x512xf32, #tpu.memory_space<vmem>>, %arg5: memref<16x512xf32, #tpu.memory_space<vmem>>, %arg6: memref<16x512xf32, #tpu.memory_space<vmem>>, %arg7: memref<1x512xf32, #tpu.memory_space<vmem>>, %arg8: memref<1x512xf32, #tpu.memory_space<vmem>>, %arg9: memref<512x512xbf16, #tpu.memory_space<vmem>>, %arg10: memref<1x512xf32, #tpu.memory_space<vmem>>, %arg11: memref<8x1xi32, #tpu.memory_space<vmem>>, %arg12: memref<1x1xf32, #tpu.memory_space<vmem>>, %arg13: memref<8x16xf32, #tpu.memory_space<vmem>>, %arg14: memref<1x1xf32, #tpu.memory_space<vmem>>) attributes {dimension_semantics = [], scalar_prefetch = 0 : i64, scratch_operands = 0 : i64, tpu.core_type = #tpu.core_type<tc>} {
    %c0 = arith.constant 0 : index
    %c0_0 = arith.constant 0 : index
    %0 = vector.load %arg0[%c0, %c0_0] : memref<8x512xf32, #tpu.memory_space<vmem>>, vector<8x512xf32>
    %1 = arith.truncf %0 : vector<8x512xf32> to vector<8x512xbf16>
    %c0_1 = arith.constant 0 : index
    %c0_2 = arith.constant 0 : index
    %2 = vector.load %arg1[%c0_1, %c0_2] : memref<512x128xbf16, #tpu.memory_space<vmem>>, vector<512x128xbf16>
    %cst = arith.constant dense<0.000000e+00> : vector<8x128xf32>
    %3 = tpu.matmul %1, %2, %cst {dimension_numbers = #tpu.dot_dimension_numbers<[1], [0], [0], [1], [0, 0, 1, 1], [], []>} : vector<8x512xbf16>, vector<512x128xbf16>, vector<8x128xf32> -> vector<8x128xf32>
    %c0_3 = arith.constant 0 : index
    %c0_4 = arith.constant 0 : index
    %4 = vector.load %arg2[%c0_3, %c0_4] : memref<1x128xf32, #tpu.memory_space<vmem>>, vector<1x128xf32>
    %5 = vector.broadcast %4 : vector<1x128xf32> to vector<8x128xf32>
    %6 = arith.addf %3, %5 : vector<8x128xf32>
    %cst_5 = arith.constant 0.000000e+00 : f32
    %7 = vector.broadcast %cst_5 : f32 to vector<8x128xf32>
    %8 = arith.maximumf %6, %7 : vector<8x128xf32>
    %9 = arith.truncf %8 : vector<8x128xf32> to vector<8x128xbf16>
    %c0_6 = arith.constant 0 : index
    %c0_7 = arith.constant 0 : index
    %10 = vector.load %arg3[%c0_6, %c0_7] : memref<128x512xbf16, #tpu.memory_space<vmem>>, vector<128x512xbf16>
    %cst_8 = arith.constant dense<0.000000e+00> : vector<8x512xf32>
    %11 = tpu.matmul %9, %10, %cst_8 {dimension_numbers = #tpu.dot_dimension_numbers<[1], [0], [0], [1], [0, 0, 1, 1], [], []>} : vector<8x128xbf16>, vector<128x512xbf16>, vector<8x512xf32> -> vector<8x512xf32>
    %c0_9 = arith.constant 0 : index
    %c0_10 = arith.constant 0 : index
    %12 = vector.load %arg4[%c0_9, %c0_10] : memref<1x512xf32, #tpu.memory_space<vmem>>, vector<1x512xf32>
    %13 = vector.broadcast %12 : vector<1x512xf32> to vector<8x512xf32>
    %14 = arith.addf %11, %13 : vector<8x512xf32>
    %15 = arith.mulf %14, %14 : vector<8x512xf32>
    %cst_11 = arith.constant dense<0.000000e+00> : vector<8xf32>
    %16 = vector.multi_reduction <add>, %15, %cst_11 [1] : vector<8x512xf32> to vector<8xf32>
    %17 = vector.shape_cast %16 : vector<8xf32> to vector<8x1xf32>
    %cst_12 = arith.constant 9.99999996E-13 : f32
    %18 = vector.broadcast %cst_12 : f32 to vector<8x1xf32>
    %19 = arith.addf %17, %18 : vector<8x1xf32>
    %20 = math.rsqrt %19 : vector<8x1xf32>
    %21 = vector.broadcast %20 : vector<8x1xf32> to vector<8x512xf32>
    %22 = arith.mulf %14, %21 : vector<8x512xf32>
    %c0_13 = arith.constant 0 : index
    %c0_14 = arith.constant 0 : index
    %23 = vector.load %arg5[%c0_13, %c0_14] : memref<16x512xf32, #tpu.memory_space<vmem>>, vector<16x512xf32>
    %c0_15 = arith.constant 0 : index
    %c0_16 = arith.constant 0 : index
    %24 = vector.load %arg6[%c0_15, %c0_16] : memref<16x512xf32, #tpu.memory_space<vmem>>, vector<16x512xf32>
    %25 = arith.addf %23, %24 : vector<16x512xf32>
    %cst_17 = arith.constant dense<0.000000e+00> : vector<16xf32>
    %26 = vector.multi_reduction <add>, %25, %cst_17 [1] : vector<16x512xf32> to vector<16xf32>
    %27 = vector.shape_cast %26 : vector<16xf32> to vector<16x1xf32>
    %cst_18 = arith.constant 5.120000e+02 : f32
    %28 = vector.broadcast %cst_18 : f32 to vector<16x1xf32>
    %29 = arith.divf %27, %28 : vector<16x1xf32>
    %30 = vector.broadcast %29 : vector<16x1xf32> to vector<16x512xf32>
    %31 = arith.subf %25, %30 : vector<16x512xf32>
    %32 = arith.mulf %31, %31 : vector<16x512xf32>
    %cst_19 = arith.constant dense<0.000000e+00> : vector<16xf32>
    %33 = vector.multi_reduction <add>, %32, %cst_19 [1] : vector<16x512xf32> to vector<16xf32>
    %34 = vector.shape_cast %33 : vector<16xf32> to vector<16x1xf32>
    %cst_20 = arith.constant 5.120000e+02 : f32
    %35 = vector.broadcast %cst_20 : f32 to vector<16x1xf32>
    %36 = arith.divf %34, %35 : vector<16x1xf32>
    %37 = vector.broadcast %29 : vector<16x1xf32> to vector<16x512xf32>
    %38 = arith.subf %25, %37 : vector<16x512xf32>
    %cst_21 = arith.constant 9.99999974E-6 : f32
    %39 = vector.broadcast %cst_21 : f32 to vector<16x1xf32>
    %40 = arith.addf %36, %39 : vector<16x1xf32>
    %41 = math.rsqrt %40 : vector<16x1xf32>
    %42 = vector.broadcast %41 : vector<16x1xf32> to vector<16x512xf32>
    %43 = arith.mulf %38, %42 : vector<16x512xf32>
    %c0_22 = arith.constant 0 : index
    %c0_23 = arith.constant 0 : index
    %44 = vector.load %arg7[%c0_22, %c0_23] : memref<1x512xf32, #tpu.memory_space<vmem>>, vector<1x512xf32>
    %45 = vector.broadcast %44 : vector<1x512xf32> to vector<16x512xf32>
    %46 = arith.mulf %43, %45 : vector<16x512xf32>
    %c0_24 = arith.constant 0 : index
    %c0_25 = arith.constant 0 : index
    %47 = vector.load %arg8[%c0_24, %c0_25] : memref<1x512xf32, #tpu.memory_space<vmem>>, vector<1x512xf32>
    %48 = vector.broadcast %47 : vector<1x512xf32> to vector<16x512xf32>
    %49 = arith.addf %46, %48 : vector<16x512xf32>
    %50 = arith.truncf %49 : vector<16x512xf32> to vector<16x512xbf16>
    %c0_26 = arith.constant 0 : index
    %c0_27 = arith.constant 0 : index
    %51 = vector.load %arg9[%c0_26, %c0_27] : memref<512x512xbf16, #tpu.memory_space<vmem>>, vector<512x512xbf16>
    %cst_28 = arith.constant dense<0.000000e+00> : vector<16x512xf32>
    %52 = tpu.matmul %50, %51, %cst_28 {dimension_numbers = #tpu.dot_dimension_numbers<[1], [0], [0], [1], [0, 0, 1, 1], [], []>} : vector<16x512xbf16>, vector<512x512xbf16>, vector<16x512xf32> -> vector<16x512xf32>
    %c0_29 = arith.constant 0 : index
    %c0_30 = arith.constant 0 : index
    %53 = vector.load %arg10[%c0_29, %c0_30] : memref<1x512xf32, #tpu.memory_space<vmem>>, vector<1x512xf32>
    %54 = vector.broadcast %53 : vector<1x512xf32> to vector<16x512xf32>
    %55 = arith.addf %52, %54 : vector<16x512xf32>
    %56 = arith.mulf %55, %55 : vector<16x512xf32>
    %cst_31 = arith.constant dense<0.000000e+00> : vector<16xf32>
    %57 = vector.multi_reduction <add>, %56, %cst_31 [1] : vector<16x512xf32> to vector<16xf32>
    %58 = vector.shape_cast %57 : vector<16xf32> to vector<16x1xf32>
    %cst_32 = arith.constant 9.99999996E-13 : f32
    %59 = vector.broadcast %cst_32 : f32 to vector<16x1xf32>
    %60 = arith.addf %58, %59 : vector<16x1xf32>
    %61 = math.rsqrt %60 : vector<16x1xf32>
    %62 = vector.broadcast %61 : vector<16x1xf32> to vector<16x512xf32>
    %63 = arith.mulf %55, %62 : vector<16x512xf32>
    %c0_33 = arith.constant 0 : index
    %c0_34 = arith.constant 0 : index
    %64 = vector.load %arg12[%c0_33, %c0_34] : memref<1x1xf32, #tpu.memory_space<vmem>>, vector<1x1xf32>
    %65 = math.exp %64 : vector<1x1xf32>
    %66 = arith.truncf %22 : vector<8x512xf32> to vector<8x512xbf16>
    %67 = arith.truncf %63 : vector<16x512xf32> to vector<16x512xbf16>
    %cst_35 = arith.constant dense<0.000000e+00> : vector<8x16xf32>
    %68 = tpu.matmul %66, %67, %cst_35 {dimension_numbers = #tpu.dot_dimension_numbers<[1], [1], [0], [0], [0, 0, 1, 0], [], []>} : vector<8x512xbf16>, vector<16x512xbf16>, vector<8x16xf32> -> vector<8x16xf32>
    %69 = vector.broadcast %65 : vector<1x1xf32> to vector<8x16xf32>
    %70 = arith.mulf %69, %68 : vector<8x16xf32>
    %c0_36 = arith.constant 0 : index
    %c0_37 = arith.constant 0 : index
    %71 = vector.load %arg13[%c0_36, %c0_37] : memref<8x16xf32, #tpu.memory_space<vmem>>, vector<8x16xf32>
    tpu.vector_store %arg13[%c0_36, %c0_37], %70 {strides = array<i32>} : memref<8x16xf32, #tpu.memory_space<vmem>>, vector<8x16xf32>,
    %cst_38 = arith.constant dense<0xFF800000> : vector<8xf32>
    %72 = vector.multi_reduction <maximumf>, %70, %cst_38 [1] : vector<8x16xf32> to vector<8xf32>
    %73 = vector.shape_cast %72 : vector<8xf32> to vector<8x1xf32>
    %74 = vector.broadcast %73 : vector<8x1xf32> to vector<8x16xf32>
    %75 = arith.subf %70, %74 : vector<8x16xf32>
    %76 = math.exp %75 : vector<8x16xf32>
    %cst_39 = arith.constant dense<0.000000e+00> : vector<8xf32>
    %77 = vector.multi_reduction <add>, %76, %cst_39 [1] : vector<8x16xf32> to vector<8xf32>
    %78 = vector.shape_cast %77 : vector<8xf32> to vector<8x1xf32>
    %79 = math.log %78 : vector<8x1xf32>
    %80 = vector.broadcast %79 : vector<8x1xf32> to vector<8x16xf32>
    %81 = arith.subf %75, %80 : vector<8x16xf32>
    %82 = tpu.iota {dimensions = array<i32: 1>} : vector<8x16xi32>
    %c0_40 = arith.constant 0 : index
    %c0_41 = arith.constant 0 : index
    %83 = vector.load %arg11[%c0_40, %c0_41] : memref<8x1xi32, #tpu.memory_space<vmem>>, vector<8x1xi32>
    %84 = vector.broadcast %83 : vector<8x1xi32> to vector<8x16xi32>
    %85 = arith.cmpi eq, %82, %84 : vector<8x16xi32>
    %86 = arith.extui %85 : vector<8x16xi1> to vector<8x16xi32>
    %87 = arith.sitofp %86 : vector<8x16xi32> to vector<8x16xf32>
    %88 = arith.mulf %87, %81 : vector<8x16xf32>
    %cst_42 = arith.constant dense<0.000000e+00> : vector<8xf32>
    %89 = vector.multi_reduction <add>, %88, %cst_42 [1] : vector<8x16xf32> to vector<8xf32>
    %90 = vector.shape_cast %89 : vector<8xf32> to vector<8x1xf32>
    %cst_43 = arith.constant 0.000000e+00 : f32
    %91 = vector.broadcast %cst_43 : f32 to vector<8x1xf32>
    %92 = arith.subf %91, %90 : vector<8x1xf32>
    %cst_44 = arith.constant dense<0.000000e+00> : vector<1xf32>
    %93 = vector.multi_reduction <add>, %92, %cst_44 [0] : vector<8x1xf32> to vector<1xf32>
    %94 = vector.shape_cast %93 : vector<1xf32> to vector<1x1xf32>
    %cst_45 = arith.constant 8.000000e+00 : f32
    %95 = vector.broadcast %cst_45 : f32 to vector<1x1xf32>
    %96 = arith.divf %94, %95 : vector<1x1xf32>
    %c0_46 = arith.constant 0 : index
    %c0_47 = arith.constant 0 : index
    %97 = vector.load %arg14[%c0_46, %c0_47] : memref<1x1xf32, #tpu.memory_space<vmem>>, vector<1x1xf32>
    tpu.vector_store %arg14[%c0_46, %c0_47], %96 {strides = array<i32>} : memref<1x1xf32, #tpu.memory_space<vmem>>, vector<1x1xf32>,
    return
  }
}

</mosaic_0001>

<llo_original>
// kernel: custom_clip_forward.1
$region0: #{custom_clip_forward.1}
  #allocation0 [shape = 'u32[]', space=smem, size = 0x4, offset = 0x4, fixed_abs, tag = 'smem constant byte address 0x4 - core index']
  #allocation1 [shape = 'u32[144,128]{1,0:T(1,128)}', space=vmem, size = 0x12000, scoped, tag = 'internal scratch']
  #allocation2 [shape = 'f32[1,1]{1,0:T(1,128)S(1)}', space=vmem, size = 0x200, scoped, tag = 'scoped memory for custom_clip_forward.1']
  %s0 = inlined_call_operand.vmem [shape: f32[8,512], index: 0, kind: input, shape index: {}]
  %s1 = inlined_call_operand.vmem [shape: bf16[512,128], index: 1, kind: input, shape index: {}]
  %s2 = inlined_call_operand.vmem [shape: f32[1,128], index: 2, kind: input, shape index: {}]
  %s3 = inlined_call_operand.hbm [shape: bf16[128,512], index: 3, kind: input, shape index: {}]
  %s4 = inlined_call_operand.vmem [shape: f32[1,512], index: 4, kind: input, shape index: {}]
  %s5 = inlined_call_operand.vmem [shape: f32[16,512], index: 5, kind: input, shape index: {}]
  %s6 = inlined_call_operand.vmem [shape: f32[16,512], index: 6, kind: input, shape index: {}]
  %s7 = inlined_call_operand.vmem [shape: f32[1,512], index: 7, kind: input, shape index: {}]
  %s8 = inlined_call_operand.vmem [shape: f32[1,512], index: 8, kind: input, shape index: {}]
  %s9 = inlined_call_operand.vmem [shape: bf16[512,512], index: 9, kind: input, shape index: {}]
  %s10 = inlined_call_operand.vmem [shape: f32[1,512], index: 10, kind: input, shape index: {}]
  %s11 = inlined_call_operand.vmem [shape: s32[8,1], index: 11, kind: input, shape index: {}]
  %s12 = inlined_call_operand.<no memory space> [shape: f32[1,1], index: 12, kind: input, shape index: {}]
  %s13 = inlined_call_operand.hbm [shape: f32[8,16], index: 13, kind: output, shape index: {0}]
  %s14 = inlined_call_operand.hbm [shape: f32[1,1], index: 14, kind: output, shape index: {1}]
  %15 = xla_tuple %s13, %s14
  %s16 = sld [smem:[#allocation0]]
  $region74: #{custom_clip_forward.1} parent=0
    _
  %s18 = ssub.s32 1, %s16
  %s19 = scalar_select 0, %s18, %s16
  %v20 = vstv %s12
  %21 = vst [vmem:[#allocation2] sm:$0x1] %v20
  $region1: #{custom_clip_forward.1} parent=0
    #allocation3 [shape = 'u8[131072]{0}', space=vmem, size = 0x20000, scoped, tag = 'input window, operand 3, single buffered']
    #allocation4 [shape = 's32[1]{0}', space=sflag, size = 0x4, scoped, tag = 'scoped memory for custom_clip_forward.1']
    #allocation5 [shape = 's32[1]{0}', space=sflag, size = 0x4, scoped, tag = 'scoped memory for custom_clip_forward.1']
    #allocation6 [shape = 'u8[4096]{0}', space=vmem, size = 0x1000, scoped, tag = 'output window, operand 0, single buffered']
    #allocation7 [shape = 'u8[512]{0}', space=vmem, size = 0x400, scoped, tag = 'output window, operand 1, single buffered']
    #allocation8 [shape = 's32[1]{0}', space=sflag, size = 0x4, scoped, tag = 'scoped memory for custom_clip_forward.1']
    %22 = vsyncpa [#allocation4], 0
    %23 = vsyncpa [#allocation5], 0
    %24 = vsyncpa [#allocation8], 0
    // Predicated region
    $region2: #{custom_clip_forward.1} parent=1 // pred_check
      _
    $region3: #{custom_clip_forward.1} parent=1 // pred_check_branch
      %26 = sbr.rel (0) target = $region5
    $region4: #{custom_clip_forward.1} parent=1 // pred_region
      _
    $region5: #{custom_clip_forward.1} parent=1 // pred_fallthru
      _
    // Predicated region
    $region6: #{custom_clip_forward.1} parent=1 // pred_check
      _
    $region7: #{custom_clip_forward.1} parent=1 // pred_check_branch
      %28 = sbr.rel (0) target = $region9
    $region8: #{custom_clip_forward.1} parent=1 // pred_region
      _
    $region9: #{custom_clip_forward.1} parent=1 // pred_fallthru
      _
    // Predicated region
    $region10: #{custom_clip_forward.1} parent=1 // pred_check
      _
    $region11: #{custom_clip_forward.1} parent=1 // pred_check_branch
      %30 = sbr.rel (0) target = $region13
    $region12: #{custom_clip_forward.1} parent=1 // pred_region
      _
    $region13: #{custom_clip_forward.1} parent=1 // pred_fallthru
      _
    // Predicated region
    $region14: #{custom_clip_forward.1} parent=1 // pred_check
      _
    $region15: #{custom_clip_forward.1} parent=1 // pred_check_branch
      %32 = sbr.rel (0) target = $region17
    $region16: #{custom_clip_forward.1} parent=1 // pred_region
      %s34 = ssub.s32 4096, 4096
      %35 = vsyncadd [#allocation4], %s34
      %s36 = sshll.u32 [#allocation3], 4
      %s37 = int_to_ptr.vmem [resolvable:$true] %s36
      %42 = dma.hbm_to_vmem [thread:$0]  %s3, 4096, %s37, [#allocation4], 256, 256, 16
    $region17: #{custom_clip_forward.1} parent=1 // pred_fallthru
      _
    // Predicated region
    $region18: #{custom_clip_forward.1} parent=1 // pred_check
      _
    $region19: #{custom_clip_forward.1} parent=1 // pred_check_branch
      %44 = sbr.rel (0) target = $region21
    $region20: #{custom_clip_forward.1} parent=1 // pred_region
      _
    $region21: #{custom_clip_forward.1} parent=1 // pred_fallthru
      _
    // Predicated region
    $region22: #{custom_clip_forward.1} parent=1 // pred_check
      _
    $region23: #{custom_clip_forward.1} parent=1 // pred_check_branch
      %46 = sbr.rel (0) target = $region25
    $region24: #{custom_clip_forward.1} parent=1 // pred_region
      _
    $region25: #{custom_clip_forward.1} parent=1 // pred_fallthru
      _
    // Predicated region
    $region26: #{custom_clip_forward.1} parent=1 // pred_check
      _
    $region27: #{custom_clip_forward.1} parent=1 // pred_check_branch
      %48 = sbr.rel (0) target = $region29
    $region28: #{custom_clip_forward.1} parent=1 // pred_region
      _
    $region29: #{custom_clip_forward.1} parent=1 // pred_fallthru
      _
    // Predicated region
    $region30: #{custom_clip_forward.1} parent=1 // pred_check
      _
    $region31: #{custom_clip_forward.1} parent=1 // pred_check_branch
      %50 = sbr.rel (0) target = $region33
    $region32: #{custom_clip_forward.1} parent=1 // pred_region
      _
    $region33: #{custom_clip_forward.1} parent=1 // pred_fallthru
      _
    // Predicated region
    $region34: #{custom_clip_forward.1} parent=1 // pred_check
      _
    $region35: #{custom_clip_forward.1} parent=1 // pred_check_branch
      %52 = sbr.rel (0) target = $region37
    $region36: #{custom_clip_forward.1} parent=1 // pred_region
      _
    $region37: #{custom_clip_forward.1} parent=1 // pred_fallthru
      _
    // Predicated region
    $region38: #{custom_clip_forward.1} parent=1 // pred_check
      _
    $region39: #{custom_clip_forward.1} parent=1 // pred_check_branch
      %54 = sbr.rel (0) target = $region41
    $region40: #{custom_clip_forward.1} parent=1 // pred_region
      _
    $region41: #{custom_clip_forward.1} parent=1 // pred_fallthru
      _
    // Predicated region
    $region42: #{custom_clip_forward.1} parent=1 // pred_check
      _
    $region43: #{custom_clip_forward.1} parent=1 // pred_check_branch
      %56 = sbr.rel (0) target = $region45
    $region44: #{custom_clip_forward.1} parent=1 // pred_region
      _
    $region45: #{custom_clip_forward.1} parent=1 // pred_fallthru
      _
    // Predicated region
    $region46: #{custom_clip_forward.1} parent=1 // pred_check
      _
    $region47: #{custom_clip_forward.1} parent=1 // pred_check_branch
      %58 = sbr.rel (0) target = $region49
    $region48: #{custom_clip_forward.1} parent=1 // pred_region
      _
    $region49: #{custom_clip_forward.1} parent=1 // pred_fallthru
      _
    // Predicated region
    $region50: #{custom_clip_forward.1} parent=1 // pred_check
      _
    $region51: #{custom_clip_forward.1} parent=1 // pred_check_branch
      %60 = sbr.rel (0) target = $region53
    $region52: #{custom_clip_forward.1} parent=1 // pred_region
      _
    $region53: #{custom_clip_forward.1} parent=1 // pred_fallthru
      _
    // Predicated region
    $region54: #{custom_clip_forward.1} parent=1 // pred_check
      _
    $region55: #{custom_clip_forward.1} parent=1 // pred_check_branch
      %62 = sbr.rel (0) target = $region57
    $region56: #{custom_clip_forward.1} parent=1 // pred_region
      %63 = dma.done [#allocation4], 4096
    $region57: #{custom_clip_forward.1} parent=1 // pred_fallthru
      _
    %v65 = vld [vmem:[%s0] sm:$0xff]
    %v66 = vld [vmem:[%s0 + $0x8] sm:$0xff]
    %v67 = vld [vmem:[%s0 + $0x10] sm:$0xff]
    %v68 = vld [vmem:[%s0 + $0x18] sm:$0xff]
    %v69 = vpack.c.bf16 %v65, %v65
    %v70 = vpack.c.bf16 %v66, %v66
    %v71 = vpack.c.bf16 %v67, %v67
    %v72 = vpack.c.bf16 %v68, %v68
    %v73 = vld [vmem:[%s1] sm:$0xf]
    %v74 = vld [vmem:[%s1 + $0x4] sm:$0xf]
    %v75 = vld [vmem:[%s1 + $0x8] sm:$0xf]
    %v76 = vld [vmem:[%s1 + $0xc] sm:$0xf]
    %v77 = vld [vmem:[%s1 + $0x10] sm:$0xf]
    %v78 = vld [vmem:[%s1 + $0x14] sm:$0xf]
    %v79 = vld [vmem:[%s1 + $0x18] sm:$0xf]
    %v80 = vld [vmem:[%s1 + $0x1c] sm:$0xf]
    %v81 = vld [vmem:[%s1 + $0x20] sm:$0xf]
    %v82 = vld [vmem:[%s1 + $0x24] sm:$0xf]
    %v83 = vld [vmem:[%s1 + $0x28] sm:$0xf]
    %v84 = vld [vmem:[%s1 + $0x2c] sm:$0xf]
    %v85 = vld [vmem:[%s1 + $0x30] sm:$0xf]
    %v86 = vld [vmem:[%s1 + $0x34] sm:$0xf]
    %v87 = vld [vmem:[%s1 + $0x38] sm:$0xf]
    %v88 = vld [vmem:[%s1 + $0x3c] sm:$0xf]
    %v89 = vld [vmem:[%s1 + $0x40] sm:$0xf]
    %v90 = vld [vmem:[%s1 + $0x44] sm:$0xf]
    %v91 = vld [vmem:[%s1 + $0x48] sm:$0xf]
    %v92 = vld [vmem:[%s1 + $0x4c] sm:$0xf]
    %v93 = vld [vmem:[%s1 + $0x50] sm:$0xf]
    %v94 = vld [vmem:[%s1 + $0x54] sm:$0xf]
    %v95 = vld [vmem:[%s1 + $0x58] sm:$0xf]
    %v96 = vld [vmem:[%s1 + $0x5c] sm:$0xf]
    %v97 = vld [vmem:[%s1 + $0x60] sm:$0xf]
    %v98 = vld [vmem:[%s1 + $0x64] sm:$0xf]
    %v99 = vld [vmem:[%s1 + $0x68] sm:$0xf]
    %v100 = vld [vmem:[%s1 + $0x6c] sm:$0xf]
    %v101 = vld [vmem:[%s1 + $0x70] sm:$0xf]
    %v102 = vld [vmem:[%s1 + $0x74] sm:$0xf]
    %v103 = vld [vmem:[%s1 + $0x78] sm:$0xf]
    %v104 = vld [vmem:[%s1 + $0x7c] sm:$0xf]
    %v105 = vld [vmem:[%s1 + $0x80] sm:$0xf]
    %v106 = vld [vmem:[%s1 + $0x84] sm:$0xf]
    %v107 = vld [vmem:[%s1 + $0x88] sm:$0xf]
    %v108 = vld [vmem:[%s1 + $0x8c] sm:$0xf]
    %v109 = vld [vmem:[%s1 + $0x90] sm:$0xf]
    %v110 = vld [vmem:[%s1 + $0x94] sm:$0xf]
    %v111 = vld [vmem:[%s1 + $0x98] sm:$0xf]
    %v112 = vld [vmem:[%s1 + $0x9c] sm:$0xf]
    %v113 = vld [vmem:[%s1 + $0xa0] sm:$0xf]
    %v114 = vld [vmem:[%s1 + $0xa4] sm:$0xf]
    %v115 = vld [vmem:[%s1 + $0xa8] sm:$0xf]
    %v116 = vld [vmem:[%s1 + $0xac] sm:$0xf]
    %v117 = vld [vmem:[%s1 + $0xb0] sm:$0xf]
    %v118 = vld [vmem:[%s1 + $0xb4] sm:$0xf]
    %v119 = vld [vmem:[%s1 + $0xb8] sm:$0xf]
    %v120 = vld [vmem:[%s1 + $0xbc] sm:$0xf]
    %v121 = vld [vmem:[%s1 + $0xc0] sm:$0xf]
    %v122 = vld [vmem:[%s1 + $0xc4] sm:$0xf]
    %v123 = vld [vmem:[%s1 + $0xc8] sm:$0xf]
    %v124 = vld [vmem:[%s1 + $0xcc] sm:$0xf]
    %v125 = vld [vmem:[%s1 + $0xd0] sm:$0xf]
    %v126 = vld [vmem:[%s1 + $0xd4] sm:$0xf]
    %v127 = vld [vmem:[%s1 + $0xd8] sm:$0xf]
    %v128 = vld [vmem:[%s1 + $0xdc] sm:$0xf]
    %v129 = vld [vmem:[%s1 + $0xe0] sm:$0xf]
    %v130 = vld [vmem:[%s1 + $0xe4] sm:$0xf]
    %v131 = vld [vmem:[%s1 + $0xe8] sm:$0xf]
    %v132 = vld [vmem:[%s1 + $0xec] sm:$0xf]
    %v133 = vld [vmem:[%s1 + $0xf0] sm:$0xf]
    %v134 = vld [vmem:[%s1 + $0xf4] sm:$0xf]
    %v135 = vld [vmem:[%s1 + $0xf8] sm:$0xf]
    %v136 = vld [vmem:[%s1 + $0xfc] sm:$0xf]
    %v137 = vld [vmem:[%s2] sm:$0x1]
    %v139 = vlaneseq
    %v140 = vshrl.u32 %v139, 7
    %v141 = vsub.s32 0, %v140
    %v142 = vrot.slane %v137, %v141
    %v208 = vunpack.c.l.b16 %v73
    %v209 = vunpack.c.l.b16 %v74
    %v210 = vunpack.c.l.b16 %v75
    %v211 = vunpack.c.l.b16 %v76
    %v212 = vunpack.c.l.b16 %v77
    %v213 = vunpack.c.l.b16 %v78
    %v214 = vunpack.c.l.b16 %v79
    %v215 = vunpack.c.l.b16 %v80
    %v216 = vunpack.c.l.b16 %v81
    %v217 = vunpack.c.l.b16 %v82
    %v218 = vunpack.c.l.b16 %v83
    %v219 = vunpack.c.l.b16 %v84
    %v220 = vunpack.c.l.b16 %v85
    %v221 = vunpack.c.l.b16 %v86
    %v222 = vunpack.c.l.b16 %v87
    %v223 = vunpack.c.l.b16 %v88
    %v224 = vunpack.c.l.b16 %v89
    %v225 = vunpack.c.l.b16 %v90
    %v226 = vunpack.c.l.b16 %v91
    %v227 = vunpack.c.l.b16 %v92
    %v228 = vunpack.c.l.b16 %v93
    %v229 = vunpack.c.l.b16 %v94
    %v230 = vunpack.c.l.b16 %v95
    %v231 = vunpack.c.l.b16 %v96
    %v232 = vunpack.c.l.b16 %v97
    %v233 = vunpack.c.l.b16 %v98
    %v234 = vunpack.c.l.b16 %v99
    %v235 = vunpack.c.l.b16 %v100
    %v236 = vunpack.c.l.b16 %v101
    %v237 = vunpack.c.l.b16 %v102
    %v238 = vunpack.c.l.b16 %v103
    %v239 = vunpack.c.l.b16 %v104
    %v240 = vunpack.c.l.b16 %v105
    %v241 = vunpack.c.l.b16 %v106
    %v242 = vunpack.c.l.b16 %v107
    %v243 = vunpack.c.l.b16 %v108
    %v244 = vunpack.c.l.b16 %v109
    %v245 = vunpack.c.l.b16 %v110
    %v246 = vunpack.c.l.b16 %v111
    %v247 = vunpack.c.l.b16 %v112
    %v248 = vunpack.c.l.b16 %v113
    %v249 = vunpack.c.l.b16 %v114
    %v250 = vunpack.c.l.b16 %v115
    %v251 = vunpack.c.l.b16 %v116
    %v252 = vunpack.c.l.b16 %v117
    %v253 = vunpack.c.l.b16 %v118
    %v254 = vunpack.c.l.b16 %v119
    %v255 = vunpack.c.l.b16 %v120
    %v256 = vunpack.c.l.b16 %v121
    %v257 = vunpack.c.l.b16 %v122
    %v258 = vunpack.c.l.b16 %v123
    %v259 = vunpack.c.l.b16 %v124
    %v260 = vunpack.c.l.b16 %v125
    %v261 = vunpack.c.l.b16 %v126
    %v262 = vunpack.c.l.b16 %v127
    %v263 = vunpack.c.l.b16 %v128
    %v264 = vunpack.c.l.b16 %v129
    %v265 = vunpack.c.l.b16 %v130
    %v266 = vunpack.c.l.b16 %v131
    %v267 = vunpack.c.l.b16 %v132
    %v268 = vunpack.c.l.b16 %v133
    %v269 = vunpack.c.l.b16 %v134
    %v270 = vunpack.c.l.b16 %v135
    %v271 = vunpack.c.l.b16 %v136
    %v272 = vpack.c.b16 %v209, %v208
    %v273 = vpack.c.b16 %v211, %v210
    %v274 = vpack.c.b16 %v213, %v212
    %v275 = vpack.c.b16 %v215, %v214
    %v276 = vpack.c.b16 %v217, %v216
    %v277 = vpack.c.b16 %v219, %v218
    %v278 = vpack.c.b16 %v221, %v220
    %v279 = vpack.c.b16 %v223, %v222
    %v280 = vpack.c.b16 %v225, %v224
    %v281 = vpack.c.b16 %v227, %v226
    %v282 = vpack.c.b16 %v229, %v228
    %v283 = vpack.c.b16 %v231, %v230
    %v284 = vpack.c.b16 %v233, %v232
    %v285 = vpack.c.b16 %v235, %v234
    %v286 = vpack.c.b16 %v237, %v236
    %v287 = vpack.c.b16 %v239, %v238
    %v288 = vpack.c.b16 %v241, %v240
    %v289 = vpack.c.b16 %v243, %v242
    %v290 = vpack.c.b16 %v245, %v244
    %v291 = vpack.c.b16 %v247, %v246
    %v292 = vpack.c.b16 %v249, %v248
    %v293 = vpack.c.b16 %v251, %v250
    %v294 = vpack.c.b16 %v253, %v252
    %v295 = vpack.c.b16 %v255, %v254
    %v296 = vpack.c.b16 %v257, %v256
    %v297 = vpack.c.b16 %v259, %v258
    %v298 = vpack.c.b16 %v261, %v260
    %v299 = vpack.c.b16 %v263, %v262
    %v300 = vpack.c.b16 %v265, %v264
    %v301 = vpack.c.b16 %v267, %v266
    %v302 = vpack.c.b16 %v269, %v268
    %v303 = vpack.c.b16 %v271, %v270
    %336 = vmatprep.subr.bf16.mxu0 0
    %337 = vmatpush1.bf16.msra.mxu0 %v279
    %338 = vmatprep.subr.bf16.mxu0 0
    %339 = vmatpush1.bf16.msra.mxu0 %v278
    %340 = vmatprep.subr.bf16.mxu0 0
    %341 = vmatpush1.bf16.msra.mxu0 %v277
    %342 = vmatprep.subr.bf16.mxu0 0
    %343 = vmatpush1.bf16.msra.mxu0 %v276
    %344 = vmatprep.subr.bf16.mxu0 0
    %345 = vmatpush1.bf16.msra.mxu0 %v275
    %346 = vmatprep.subr.bf16.mxu0 0
    %347 = vmatpush1.bf16.msra.mxu0 %v274
    %348 = vmatprep.subr.bf16.mxu0 0
    %349 = vmatpush1.bf16.msra.mxu0 %v273
    %350 = vmatprep.subr.bf16.mxu0 0
    %351 = vmatpush1.bf16.msra.mxu0 %v272
    %352 = vmatprep.subr.bf16.mxu0 0
    %353 = vmatpush2.bf16.msra.mxu0 %v287
    %354 = vmatprep.subr.bf16.mxu0 0
    %355 = vmatpush2.bf16.msra.mxu0 %v286
    %356 = vmatprep.subr.bf16.mxu0 0
    %357 = vmatpush2.bf16.msra.mxu0 %v285
    %358 = vmatprep.subr.bf16.mxu0 0
    %359 = vmatpush2.bf16.msra.mxu0 %v284
    %360 = vmatprep.subr.bf16.mxu0 0
    %361 = vmatpush2.bf16.msra.mxu0 %v283
    %362 = vmatprep.subr.bf16.mxu0 0
    %363 = vmatpush2.bf16.msra.mxu0 %v282
    %364 = vmatprep.subr.bf16.mxu0 0
    %365 = vmatpush2.bf16.msra.mxu0 %v281
    %366 = vmatprep.subr.bf16.mxu0 0
    %367 = vmatpush2.bf16.msra.mxu0 %v280
    %368 = vmatprep.mubr.bf16.mxu0 %v70
    %369 = vmatmul.mubr.bf16.gmra.mxu0 %v69
    %v370 = vpop.f32.mrf.mxu0
    %v371 = vadd.f32 %v142, %v370
    %v372 = vpop.f32.mrf.mxu0
    %v373 = vpop.f32.mrf.mxu0
    %v374 = vpop.f32.mrf.mxu0
    %375 = vdwg.mxu0
    %376 = vmatprep.subr.bf16.mxu0 0
    %377 = vmatpush1.bf16.msra.mxu0 %v295
    %378 = vmatprep.subr.bf16.mxu0 0
    %379 = vmatpush1.bf16.msra.mxu0 %v294
    %380 = vmatprep.subr.bf16.mxu0 0
    %381 = vmatpush1.bf16.msra.mxu0 %v293
    %382 = vmatprep.subr.bf16.mxu0 0
    %383 = vmatpush1.bf16.msra.mxu0 %v292
    %384 = vmatprep.subr.bf16.mxu0 0
    %385 = vmatpush1.bf16.msra.mxu0 %v291
    %386 = vmatprep.subr.bf16.mxu0 0
    %387 = vmatpush1.bf16.msra.mxu0 %v290
    %388 = vmatprep.subr.bf16.mxu0 0
    %389 = vmatpush1.bf16.msra.mxu0 %v289
    %390 = vmatprep.subr.bf16.mxu0 0
    %391 = vmatpush1.bf16.msra.mxu0 %v288
    %392 = vmatprep.subr.bf16.mxu0 0
    %393 = vmatpush2.bf16.msra.mxu0 %v303
    %394 = vmatprep.subr.bf16.mxu0 0
    %395 = vmatpush2.bf16.msra.mxu0 %v302
    %396 = vmatprep.subr.bf16.mxu0 0
    %397 = vmatpush2.bf16.msra.mxu0 %v301
    %398 = vmatprep.subr.bf16.mxu0 0
    %399 = vmatpush2.bf16.msra.mxu0 %v300
    %400 = vmatprep.subr.bf16.mxu0 0
    %401 = vmatpush2.bf16.msra.mxu0 %v299
    %402 = vmatprep.subr.bf16.mxu0 0
    %403 = vmatpush2.bf16.msra.mxu0 %v298
    %404 = vmatprep.subr.bf16.mxu0 0
    %405 = vmatpush2.bf16.msra.mxu0 %v297
    %406 = vmatprep.subr.bf16.mxu0 0
    %407 = vmatpush2.bf16.msra.mxu0 %v296
    %408 = vmatprep.mubr.bf16.mxu0 %v72
    %409 = vmatmul.mubr.bf16.gmra.mxu0 %v71
    %v410 = vpop.f32.mrf.mxu0
    %v411 = vadd.f32 %v371, %v410
    %v412 = vpop.f32.mrf.mxu0
    %v413 = vpop.f32.mrf.mxu0
    %v414 = vpop.f32.mrf.mxu0
    %415 = vdwg.mxu0
    %v416 = vmax.f32 %v411, 0.0
    %v417 = vpack.c.bf16 %v416, %v416
    %v418 = vld [vmem:[#allocation3] sm:$0xff]
    %v419 = vld [vmem:[#allocation3 + $0x8] sm:$0xff]
    %v420 = vld [vmem:[#allocation3 + $0x10] sm:$0xff]
    %v421 = vld [vmem:[#allocation3 + $0x18] sm:$0xff]
    %v422 = vld [vmem:[#allocation3 + $0x20] sm:$0xff]
    %v423 = vld [vmem:[#allocation3 + $0x28] sm:$0xff]
    %v424 = vld [vmem:[#allocation3 + $0x30] sm:$0xff]
    %v425 = vld [vmem:[#allocation3 + $0x38] sm:$0xff]
    %v426 = vld [vmem:[#allocation3 + $0x40] sm:$0xff]
    %v427 = vld [vmem:[#allocation3 + $0x48] sm:$0xff]
    %v428 = vld [vmem:[#allocation3 + $0x50] sm:$0xff]
    %v429 = vld [vmem:[#allocation3 + $0x58] sm:$0xff]
    %v430 = vld [vmem:[#allocation3 + $0x60] sm:$0xff]
    %v431 = vld [vmem:[#allocation3 + $0x68] sm:$0xff]
    %v432 = vld [vmem:[#allocation3 + $0x70] sm:$0xff]
    %v433 = vld [vmem:[#allocation3 + $0x78] sm:$0xff]
    %v434 = vld [vmem:[#allocation3 + $0x80] sm:$0xff]
    %v435 = vld [vmem:[#allocation3 + $0x88] sm:$0xff]
    %v436 = vld [vmem:[#allocation3 + $0x90] sm:$0xff]
    %v437 = vld [vmem:[#allocation3 + $0x98] sm:$0xff]
    %v438 = vld [vmem:[#allocation3 + $0xa0] sm:$0xff]
    %v439 = vld [vmem:[#allocation3 + $0xa8] sm:$0xff]
    %v440 = vld [vmem:[#allocation3 + $0xb0] sm:$0xff]
    %v441 = vld [vmem:[#allocation3 + $0xb8] sm:$0xff]
    %v442 = vld [vmem:[#allocation3 + $0xc0] sm:$0xff]
    %v443 = vld [vmem:[#allocation3 + $0xc8] sm:$0xff]
    %v444 = vld [vmem:[#allocation3 + $0xd0] sm:$0xff]
    %v445 = vld [vmem:[#allocation3 + $0xd8] sm:$0xff]
    %v446 = vld [vmem:[#allocation3 + $0xe0] sm:$0xff]
    %v447 = vld [vmem:[#allocation3 + $0xe8] sm:$0xff]
    %v448 = vld [vmem:[#allocation3 + $0xf0] sm:$0xff]
    %v449 = vld [vmem:[#allocation3 + $0xf8] sm:$0xff]
    %v450 = vld [vmem:[%s4] sm:$0xf]
    %v452 = vlaneseq
    %v453 = vshrl.u32 %v452, 7
    %v454 = vsub.s32 0, %v453
    %v455 = vrot.slane %v450, %v454
    %v456 = vlaneseq
    %v457 = vshrl.u32 %v456, 7
    %v458 = vsub.s32 1, %v457
    %v459 = vrot.slane %v450, %v458
    %v460 = vlaneseq
    %v461 = vshrl.u32 %v460, 7
    %v462 = vsub.s32 2, %v461
    %v463 = vrot.slane %v450, %v462
    %v464 = vlaneseq
    %v465 = vshrl.u32 %v464, 7
    %v466 = vsub.s32 3, %v465
    %v467 = vrot.slane %v450, %v466
    %v504 = vunpack.c.l.b16 %v418
    %v505 = vunpack.c.h.b16 %v418
    %v506 = vunpack.c.l.b16 %v419
    %v507 = vunpack.c.h.b16 %v419
    %v508 = vunpack.c.l.b16 %v420
    %v509 = vunpack.c.h.b16 %v420
    %v510 = vunpack.c.l.b16 %v421
    %v511 = vunpack.c.h.b16 %v421
    %v512 = vunpack.c.l.b16 %v422
    %v513 = vunpack.c.h.b16 %v422
    %v514 = vunpack.c.l.b16 %v423
    %v515 = vunpack.c.h.b16 %v423
    %v516 = vunpack.c.l.b16 %v424
    %v517 = vunpack.c.h.b16 %v424
    %v518 = vunpack.c.l.b16 %v425
    %v519 = vunpack.c.h.b16 %v425
    %v520 = vunpack.c.l.b16 %v426
    %v521 = vunpack.c.h.b16 %v426
    %v522 = vunpack.c.l.b16 %v427
    %v523 = vunpack.c.h.b16 %v427
    %v524 = vunpack.c.l.b16 %v428
    %v525 = vunpack.c.h.b16 %v428
    %v526 = vunpack.c.l.b16 %v429
    %v527 = vunpack.c.h.b16 %v429
    %v528 = vunpack.c.l.b16 %v430
    %v529 = vunpack.c.h.b16 %v430
    %v530 = vunpack.c.l.b16 %v431
    %v531 = vunpack.c.h.b16 %v431
    %v532 = vunpack.c.l.b16 %v432
    %v533 = vunpack.c.h.b16 %v432
    %v534 = vunpack.c.l.b16 %v433
    %v535 = vunpack.c.h.b16 %v433
    %v536 = vunpack.c.l.b16 %v434
    %v537 = vunpack.c.h.b16 %v434
    %v538 = vunpack.c.l.b16 %v435
    %v539 = vunpack.c.h.b16 %v435
    %v540 = vunpack.c.l.b16 %v436
    %v541 = vunpack.c.h.b16 %v436
    %v542 = vunpack.c.l.b16 %v437
    %v543 = vunpack.c.h.b16 %v437
    %v544 = vunpack.c.l.b16 %v438
    %v545 = vunpack.c.h.b16 %v438
    %v546 = vunpack.c.l.b16 %v439
    %v547 = vunpack.c.h.b16 %v439
    %v548 = vunpack.c.l.b16 %v440
    %v549 = vunpack.c.h.b16 %v440
    %v550 = vunpack.c.l.b16 %v441
    %v551 = vunpack.c.h.b16 %v441
    %v552 = vunpack.c.l.b16 %v442
    %v553 = vunpack.c.h.b16 %v442
    %v554 = vunpack.c.l.b16 %v443
    %v555 = vunpack.c.h.b16 %v443
    %v556 = vunpack.c.l.b16 %v444
    %v557 = vunpack.c.h.b16 %v444
    %v558 = vunpack.c.l.b16 %v445
    %v559 = vunpack.c.h.b16 %v445
    %v560 = vunpack.c.l.b16 %v446
    %v561 = vunpack.c.h.b16 %v446
    %v562 = vunpack.c.l.b16 %v447
    %v563 = vunpack.c.h.b16 %v447
    %v564 = vunpack.c.l.b16 %v448
    %v565 = vunpack.c.h.b16 %v448
    %v566 = vunpack.c.l.b16 %v449
    %v567 = vunpack.c.h.b16 %v449
    %v568 = vpack.c.b16 %v508, %v504
    %v569 = vpack.c.b16 %v509, %v505
    %v570 = vpack.c.b16 %v510, %v506
    %v571 = vpack.c.b16 %v511, %v507
    %v572 = vpack.c.b16 %v516, %v512
    %v573 = vpack.c.b16 %v517, %v513
    %v574 = vpack.c.b16 %v518, %v514
    %v575 = vpack.c.b16 %v519, %v515
    %v576 = vpack.c.b16 %v524, %v520
    %v577 = vpack.c.b16 %v525, %v521
    %v578 = vpack.c.b16 %v526, %v522
    %v579 = vpack.c.b16 %v527, %v523
    %v580 = vpack.c.b16 %v532, %v528
    %v581 = vpack.c.b16 %v533, %v529
    %v582 = vpack.c.b16 %v534, %v530
    %v583 = vpack.c.b16 %v535, %v531
    %v584 = vpack.c.b16 %v540, %v536
    %v585 = vpack.c.b16 %v541, %v537
    %v586 = vpack.c.b16 %v542, %v538
    %v587 = vpack.c.b16 %v543, %v539
    %v588 = vpack.c.b16 %v548, %v544
    %v589 = vpack.c.b16 %v549, %v545
    %v590 = vpack.c.b16 %v550, %v546
    %v591 = vpack.c.b16 %v551, %v547
    %v592 = vpack.c.b16 %v556, %v552
    %v593 = vpack.c.b16 %v557, %v553
    %v594 = vpack.c.b16 %v558, %v554
    %v595 = vpack.c.b16 %v559, %v555
    %v596 = vpack.c.b16 %v564, %v560
    %v597 = vpack.c.b16 %v565, %v561
    %v598 = vpack.c.b16 %v566, %v562
    %v599 = vpack.c.b16 %v567, %v563
    %632 = vmatprep.subr.bf16.mxu0 %v597
    %633 = vmatpush1.bf16.msra.mxu0 %v596
    %634 = vmatprep.subr.bf16.mxu0 %v593
    %635 = vmatpush1.bf16.msra.mxu0 %v592
    %636 = vmatprep.subr.bf16.mxu0 %v589
    %637 = vmatpush1.bf16.msra.mxu0 %v588
    %638 = vmatprep.subr.bf16.mxu0 %v585
    %639 = vmatpush1.bf16.msra.mxu0 %v584
    %640 = vmatprep.subr.bf16.mxu0 %v581
    %641 = vmatpush1.bf16.msra.mxu0 %v580
    %642 = vmatprep.subr.bf16.mxu0 %v577
    %643 = vmatpush1.bf16.msra.mxu0 %v576
    %644 = vmatprep.subr.bf16.mxu0 %v573
    %645 = vmatpush1.bf16.msra.mxu0 %v572
    %646 = vmatprep.subr.bf16.mxu0 %v569
    %647 = vmatpush1.bf16.msra.mxu0 %v568
    %648 = vmatprep.subr.bf16.mxu0 0
    %649 = vmatpush2.bf16.msra.mxu0 0
    %650 = vmatprep.subr.bf16.mxu0 0
    %651 = vmatpush2.bf16.msra.mxu0 0
    %652 = vmatprep.subr.bf16.mxu0 0
    %653 = vmatpush2.bf16.msra.mxu0 0
    %654 = vmatprep.subr.bf16.mxu0 0
    %655 = vmatpush2.bf16.msra.mxu0 0
    %656 = vmatprep.subr.bf16.mxu0 0
    %657 = vmatpush2.bf16.msra.mxu0 0
    %658 = vmatprep.subr.bf16.mxu0 0
    %659 = vmatpush2.bf16.msra.mxu0 0
    %660 = vmatprep.subr.bf16.mxu0 0
    %661 = vmatpush2.bf16.msra.mxu0 0
    %662 = vmatprep.subr.bf16.mxu0 0
    %663 = vmatpush2.bf16.msra.mxu0 0
    %664 = vmatprep.mubr.bf16.mxu0 0
    %665 = vmatmul.mubr.bf16.gmra.mxu0 %v417
    %v666 = vpop.f32.mrf.mxu0
    %v667 = vadd.f32 %v455, %v666
    %v668 = vpop.f32.mrf.mxu0
    %v669 = vadd.f32 %v459, %v668
    %v670 = vpop.f32.mrf.mxu0
    %v671 = vpop.f32.mrf.mxu0
    %672 = vdwg.mxu0
    %673 = vmatprep.subr.bf16.mxu0 %v599
    %674 = vmatpush1.bf16.msra.mxu0 %v598
    %675 = vmatprep.subr.bf16.mxu0 %v595
    %676 = vmatpush1.bf16.msra.mxu0 %v594
    %677 = vmatprep.subr.bf16.mxu0 %v591
    %678 = vmatpush1.bf16.msra.mxu0 %v590
    %679 = vmatprep.subr.bf16.mxu0 %v587
    %680 = vmatpush1.bf16.msra.mxu0 %v586
    %681 = vmatprep.subr.bf16.mxu0 %v583
    %682 = vmatpush1.bf16.msra.mxu0 %v582
    %683 = vmatprep.subr.bf16.mxu0 %v579
    %684 = vmatpush1.bf16.msra.mxu0 %v578
    %685 = vmatprep.subr.bf16.mxu0 %v575
    %686 = vmatpush1.bf16.msra.mxu0 %v574
    %687 = vmatprep.subr.bf16.mxu0 %v571
    %688 = vmatpush1.bf16.msra.mxu0 %v570
    %689 = vmatprep.subr.bf16.mxu0 0
    %690 = vmatpush2.bf16.msra.mxu0 0
    %691 = vmatprep.subr.bf16.mxu0 0
    %692 = vmatpush2.bf16.msra.mxu0 0
    %693 = vmatprep.subr.bf16.mxu0 0
    %694 = vmatpush2.bf16.msra.mxu0 0
    %695 = vmatprep.subr.bf16.mxu0 0
    %696 = vmatpush2.bf16.msra.mxu0 0
    %697 = vmatprep.subr.bf16.mxu0 0
    %698 = vmatpush2.bf16.msra.mxu0 0
    %699 = vmatprep.subr.bf16.mxu0 0
    %700 = vmatpush2.bf16.msra.mxu0 0
    %701 = vmatprep.subr.bf16.mxu0 0
    %702 = vmatpush2.bf16.msra.mxu0 0
    %703 = vmatprep.subr.bf16.mxu0 0
    %704 = vmatpush2.bf16.msra.mxu0 0
    %705 = vmatprep.mubr.bf16.mxu0 0
    %706 = vmatmul.mubr.bf16.gmra.mxu0 %v417
    %v707 = vpop.f32.mrf.mxu0
    %v708 = vadd.f32 %v463, %v707
    %v709 = vpop.f32.mrf.mxu0
    %v710 = vadd.f32 %v467, %v709
    %v711 = vpop.f32.mrf.mxu0
    %v712 = vpop.f32.mrf.mxu0
    %713 = vdwg.mxu0
    %v714 = vmul.f32 %v667, %v667
    %v715 = vmul.f32 %v669, %v669
    %v716 = vmul.f32 %v708, %v708
    %v717 = vmul.f32 %v710, %v710
    %v718 = vadd.f32 %v714, %v715
    %v719 = vadd.f32 %v718, %v716
    %v720 = vadd.f32 %v719, %v717
    %721 = vadd.xlane.f32.xlu0 %v720
    %v722 = vpop.xlane.xlu0 %721
    %v723 = vadd.f32 %v722, 1e-12
    %v724 = vrsqrt.pop %v723
    %v725 = vmul.f32 %v667, %v724
    %v726 = vmul.f32 %v669, %v724
    %v727 = vmul.f32 %v708, %v724
    %v728 = vmul.f32 %v710, %v724
    %v729 = vld [vmem:[%s5] sm:$0xff]
    %v730 = vld [vmem:[%s5 + $0x8] sm:$0xff]
    %v731 = vld [vmem:[%s5 + $0x10] sm:$0xff]
    %v732 = vld [vmem:[%s5 + $0x18] sm:$0xff]
    %v733 = vld [vmem:[%s5 + $0x20] sm:$0xff]
    %v734 = vld [vmem:[%s5 + $0x28] sm:$0xff]
    %v735 = vld [vmem:[%s5 + $0x30] sm:$0xff]
    %v736 = vld [vmem:[%s5 + $0x38] sm:$0xff]
    %v737 = vld [vmem:[%s6] sm:$0xff]
    %v738 = vld [vmem:[%s6 + $0x8] sm:$0xff]
    %v739 = vld [vmem:[%s6 + $0x10] sm:$0xff]
    %v740 = vld [vmem:[%s6 + $0x18] sm:$0xff]
    %v741 = vld [vmem:[%s6 + $0x20] sm:$0xff]
    %v742 = vld [vmem:[%s6 + $0x28] sm:$0xff]
    %v743 = vld [vmem:[%s6 + $0x30] sm:$0xff]
    %v744 = vld [vmem:[%s6 + $0x38] sm:$0xff]
    %v745 = vadd.f32 %v729, %v737
    %v746 = vadd.f32 %v730, %v738
    %v747 = vadd.f32 %v731, %v739
    %v748 = vadd.f32 %v732, %v740
    %v749 = vadd.f32 %v733, %v741
    %v750 = vadd.f32 %v734, %v742
    %v751 = vadd.f32 %v735, %v743
    %v752 = vadd.f32 %v736, %v744
    %v753 = vadd.f32 %v745, %v746
    %v754 = vadd.f32 %v753, %v747
    %v755 = vadd.f32 %v754, %v748
    %756 = vadd.xlane.f32.xlu0 %v755
    %v757 = vpop.xlane.xlu0 %756
    %v758 = vadd.f32 %v749, %v750
    %v759 = vadd.f32 %v758, %v751
    %v760 = vadd.f32 %v759, %v752
    %761 = vadd.xlane.f32.xlu0 %v760
    %v762 = vpop.xlane.xlu0 %761
    %v763 = vrcp.pop 512.0
    %v764 = vmul.f32 %v757, %v763
    %v765 = vmul.f32 %v762, %v763
    %v766 = vsub.f32 %v745, %v764
    %v767 = vsub.f32 %v746, %v764
    %v768 = vsub.f32 %v747, %v764
    %v769 = vsub.f32 %v748, %v764
    %v770 = vsub.f32 %v749, %v765
    %v771 = vsub.f32 %v750, %v765
    %v772 = vsub.f32 %v751, %v765
    %v773 = vsub.f32 %v752, %v765
    %v774 = vmul.f32 %v766, %v766
    %v775 = vmul.f32 %v767, %v767
    %v776 = vmul.f32 %v768, %v768
    %v777 = vmul.f32 %v769, %v769
    %v778 = vmul.f32 %v770, %v770
    %v779 = vmul.f32 %v771, %v771
    %v780 = vmul.f32 %v772, %v772
    %v781 = vmul.f32 %v773, %v773
    %v782 = vadd.f32 %v774, %v775
    %v783 = vadd.f32 %v782, %v776
    %v784 = vadd.f32 %v783, %v777
    %785 = vadd.xlane.f32.xlu0 %v784
    %v786 = vpop.xlane.xlu0 %785
    %v787 = vadd.f32 %v778, %v779
    %v788 = vadd.f32 %v787, %v780
    %v789 = vadd.f32 %v788, %v781
    %790 = vadd.xlane.f32.xlu0 %v789
    %v791 = vpop.xlane.xlu0 %790
    %v792 = vmul.f32 %v786, %v763
    %v793 = vmul.f32 %v791, %v763
    %v794 = vadd.f32 %v792, 1e-05
    %v795 = vadd.f32 %v793, 1e-05
    %v796 = vrsqrt.pop %v794
    %v797 = vrsqrt.pop %v795
    %v798 = vmul.f32 %v766, %v796
    %v799 = vmul.f32 %v767, %v796
    %v800 = vmul.f32 %v768, %v796
    %v801 = vmul.f32 %v769, %v796
    %v802 = vmul.f32 %v770, %v797
    %v803 = vmul.f32 %v771, %v797
    %v804 = vmul.f32 %v772, %v797
    %v805 = vmul.f32 %v773, %v797
    %v806 = vld [vmem:[%s7] sm:$0xf]
    %v808 = vlaneseq
    %v809 = vshrl.u32 %v808, 7
    %v810 = vsub.s32 0, %v809
    %v811 = vrot.slane %v806, %v810
    %v812 = vlaneseq
    %v813 = vshrl.u32 %v812, 7
    %v814 = vsub.s32 1, %v813
    %v815 = vrot.slane %v806, %v814
    %v816 = vlaneseq
    %v817 = vshrl.u32 %v816, 7
    %v818 = vsub.s32 2, %v817
    %v819 = vrot.slane %v806, %v818
    %v820 = vlaneseq
    %v821 = vshrl.u32 %v820, 7
    %v822 = vsub.s32 3, %v821
    %v823 = vrot.slane %v806, %v822
    %v828 = vmul.f32 %v798, %v811
    %v829 = vmul.f32 %v799, %v815
    %v830 = vmul.f32 %v800, %v819
    %v831 = vmul.f32 %v801, %v823
    %v832 = vmul.f32 %v802, %v811
    %v833 = vmul.f32 %v803, %v815
    %v834 = vmul.f32 %v804, %v819
    %v835 = vmul.f32 %v805, %v823
    %v836 = vld [vmem:[%s8] sm:$0xf]
    %v838 = vlaneseq
    %v839 = vshrl.u32 %v838, 7
    %v840 = vsub.s32 0, %v839
    %v841 = vrot.slane %v836, %v840
    %v842 = vlaneseq
    %v843 = vshrl.u32 %v842, 7
    %v844 = vsub.s32 1, %v843
    %v845 = vrot.slane %v836, %v844
    %v846 = vlaneseq
    %v847 = vshrl.u32 %v846, 7
    %v848 = vsub.s32 2, %v847
    %v849 = vrot.slane %v836, %v848
    %v850 = vlaneseq
    %v851 = vshrl.u32 %v850, 7
    %v852 = vsub.s32 3, %v851
    %v853 = vrot.slane %v836, %v852
    %v858 = vadd.f32 %v828, %v841
    %v859 = vadd.f32 %v829, %v845
    %v860 = vadd.f32 %v830, %v849
    %v861 = vadd.f32 %v831, %v853
    %v862 = vadd.f32 %v832, %v841
    %v863 = vadd.f32 %v833, %v845
    %v864 = vadd.f32 %v834, %v849
    %v865 = vadd.f32 %v835, %v853
    %v866 = vpack.c.bf16 %v862, %v858
    %v867 = vpack.c.bf16 %v863, %v859
    %v868 = vpack.c.bf16 %v864, %v860
    %v869 = vpack.c.bf16 %v865, %v861
    %v870 = vld [vmem:[%s9] sm:$0xff]
    %v871 = vld [vmem:[%s9 + $0x8] sm:$0xff]
    %v872 = vld [vmem:[%s9 + $0x10] sm:$0xff]
    %v873 = vld [vmem:[%s9 + $0x18] sm:$0xff]
    %v874 = vld [vmem:[%s9 + $0x20] sm:$0xff]
    %v875 = vld [vmem:[%s9 + $0x28] sm:$0xff]
    %v876 = vld [vmem:[%s9 + $0x30] sm:$0xff]
    %v877 = vld [vmem:[%s9 + $0x38] sm:$0xff]
    %v878 = vld [vmem:[%s9 + $0x40] sm:$0xff]
    %v879 = vld [vmem:[%s9 + $0x48] sm:$0xff]
    %v880 = vld [vmem:[%s9 + $0x50] sm:$0xff]
    %v881 = vld [vmem:[%s9 + $0x58] sm:$0xff]
    %v882 = vld [vmem:[%s9 + $0x60] sm:$0xff]
    %v883 = vld [vmem:[%s9 + $0x68] sm:$0xff]
    %v884 = vld [vmem:[%s9 + $0x70] sm:$0xff]
    %v885 = vld [vmem:[%s9 + $0x78] sm:$0xff]
    %v886 = vld [vmem:[%s9 + $0x80] sm:$0xff]
    %v887 = vld [vmem:[%s9 + $0x88] sm:$0xff]
    %v888 = vld [vmem:[%s9 + $0x90] sm:$0xff]
    %v889 = vld [vmem:[%s9 + $0x98] sm:$0xff]
    %v890 = vld [vmem:[%s9 + $0xa0] sm:$0xff]
    %v891 = vld [vmem:[%s9 + $0xa8] sm:$0xff]
    %v892 = vld [vmem:[%s9 + $0xb0] sm:$0xff]
    %v893 = vld [vmem:[%s9 + $0xb8] sm:$0xff]
    %v894 = vld [vmem:[%s9 + $0xc0] sm:$0xff]
    %v895 = vld [vmem:[%s9 + $0xc8] sm:$0xff]
    %v896 = vld [vmem:[%s9 + $0xd0] sm:$0xff]
    %v897 = vld [vmem:[%s9 + $0xd8] sm:$0xff]
    %v898 = vld [vmem:[%s9 + $0xe0] sm:$0xff]
    %v899 = vld [vmem:[%s9 + $0xe8] sm:$0xff]
    %v900 = vld [vmem:[%s9 + $0xf0] sm:$0xff]
    %v901 = vld [vmem:[%s9 + $0xf8] sm:$0xff]
    %v902 = vld [vmem:[%s9 + $0x100] sm:$0xff]
    %v903 = vld [vmem:[%s9 + $0x108] sm:$0xff]
    %v904 = vld [vmem:[%s9 + $0x110] sm:$0xff]
    %v905 = vld [vmem:[%s9 + $0x118] sm:$0xff]
    %v906 = vld [vmem:[%s9 + $0x120] sm:$0xff]
    %v907 = vld [vmem:[%s9 + $0x128] sm:$0xff]
    %v908 = vld [vmem:[%s9 + $0x130] sm:$0xff]
    %v909 = vld [vmem:[%s9 + $0x138] sm:$0xff]
    %v910 = vld [vmem:[%s9 + $0x140] sm:$0xff]
    %v911 = vld [vmem:[%s9 + $0x148] sm:$0xff]
    %v912 = vld [vmem:[%s9 + $0x150] sm:$0xff]
    %v913 = vld [vmem:[%s9 + $0x158] sm:$0xff]
    %v914 = vld [vmem:[%s9 + $0x160] sm:$0xff]
    %v915 = vld [vmem:[%s9 + $0x168] sm:$0xff]
    %v916 = vld [vmem:[%s9 + $0x170] sm:$0xff]
    %v917 = vld [vmem:[%s9 + $0x178] sm:$0xff]
    %v918 = vld [vmem:[%s9 + $0x180] sm:$0xff]
    %v919 = vld [vmem:[%s9 + $0x188] sm:$0xff]
    %v920 = vld [vmem:[%s9 + $0x190] sm:$0xff]
    %v921 = vld [vmem:[%s9 + $0x198] sm:$0xff]
    %v922 = vld [vmem:[%s9 + $0x1a0] sm:$0xff]
    %v923 = vld [vmem:[%s9 + $0x1a8] sm:$0xff]
    %v924 = vld [vmem:[%s9 + $0x1b0] sm:$0xff]
    %v925 = vld [vmem:[%s9 + $0x1b8] sm:$0xff]
    %v926 = vld [vmem:[%s9 + $0x1c0] sm:$0xff]
    %v927 = vld [vmem:[%s9 + $0x1c8] sm:$0xff]
    %v928 = vld [vmem:[%s9 + $0x1d0] sm:$0xff]
    %v929 = vld [vmem:[%s9 + $0x1d8] sm:$0xff]
    %v930 = vld [vmem:[%s9 + $0x1e0] sm:$0xff]
    %v931 = vld [vmem:[%s9 + $0x1e8] sm:$0xff]
    %v932 = vld [vmem:[%s9 + $0x1f0] sm:$0xff]
    %v933 = vld [vmem:[%s9 + $0x1f8] sm:$0xff]
    %v934 = vld [vmem:[%s9 + $0x200] sm:$0xff]
    %v935 = vld [vmem:[%s9 + $0x208] sm:$0xff]
    %v936 = vld [vmem:[%s9 + $0x210] sm:$0xff]
    %v937 = vld [vmem:[%s9 + $0x218] sm:$0xff]
    %v938 = vld [vmem:[%s9 + $0x220] sm:$0xff]
    %v939 = vld [vmem:[%s9 + $0x228] sm:$0xff]
    %v940 = vld [vmem:[%s9 + $0x230] sm:$0xff]
    %v941 = vld [vmem:[%s9 + $0x238] sm:$0xff]
    %v942 = vld [vmem:[%s9 + $0x240] sm:$0xff]
    %v943 = vld [vmem:[%s9 + $0x248] sm:$0xff]
    %v944 = vld [vmem:[%s9 + $0x250] sm:$0xff]
    %v945 = vld [vmem:[%s9 + $0x258] sm:$0xff]
    %v946 = vld [vmem:[%s9 + $0x260] sm:$0xff]
    %v947 = vld [vmem:[%s9 + $0x268] sm:$0xff]
    %v948 = vld [vmem:[%s9 + $0x270] sm:$0xff]
    %v949 = vld [vmem:[%s9 + $0x278] sm:$0xff]
    %v950 = vld [vmem:[%s9 + $0x280] sm:$0xff]
    %v951 = vld [vmem:[%s9 + $0x288] sm:$0xff]
    %v952 = vld [vmem:[%s9 + $0x290] sm:$0xff]
    %v953 = vld [vmem:[%s9 + $0x298] sm:$0xff]
    %v954 = vld [vmem:[%s9 + $0x2a0] sm:$0xff]
    %v955 = vld [vmem:[%s9 + $0x2a8] sm:$0xff]
    %v956 = vld [vmem:[%s9 + $0x2b0] sm:$0xff]
    %v957 = vld [vmem:[%s9 + $0x2b8] sm:$0xff]
    %v958 = vld [vmem:[%s9 + $0x2c0] sm:$0xff]
    %v959 = vld [vmem:[%s9 + $0x2c8] sm:$0xff]
    %v960 = vld [vmem:[%s9 + $0x2d0] sm:$0xff]
    %v961 = vld [vmem:[%s9 + $0x2d8] sm:$0xff]
    %v962 = vld [vmem:[%s9 + $0x2e0] sm:$0xff]
    %v963 = vld [vmem:[%s9 + $0x2e8] sm:$0xff]
    %v964 = vld [vmem:[%s9 + $0x2f0] sm:$0xff]
    %v965 = vld [vmem:[%s9 + $0x2f8] sm:$0xff]
    %v966 = vld [vmem:[%s9 + $0x300] sm:$0xff]
    %v967 = vld [vmem:[%s9 + $0x308] sm:$0xff]
    %v968 = vld [vmem:[%s9 + $0x310] sm:$0xff]
    %v969 = vld [vmem:[%s9 + $0x318] sm:$0xff]
    %v970 = vld [vmem:[%s9 + $0x320] sm:$0xff]
    %v971 = vld [vmem:[%s9 + $0x328] sm:$0xff]
    %v972 = vld [vmem:[%s9 + $0x330] sm:$0xff]
    %v973 = vld [vmem:[%s9 + $0x338] sm:$0xff]
    %v974 = vld [vmem:[%s9 + $0x340] sm:$0xff]
    %v975 = vld [vmem:[%s9 + $0x348] sm:$0xff]
    %v976 = vld [vmem:[%s9 + $0x350] sm:$0xff]
    %v977 = vld [vmem:[%s9 + $0x358] sm:$0xff]
    %v978 = vld [vmem:[%s9 + $0x360] sm:$0xff]
    %v979 = vld [vmem:[%s9 + $0x368] sm:$0xff]
    %v980 = vld [vmem:[%s9 + $0x370] sm:$0xff]
    %v981 = vld [vmem:[%s9 + $0x378] sm:$0xff]
    %v982 = vld [vmem:[%s9 + $0x380] sm:$0xff]
    %v983 = vld [vmem:[%s9 + $0x388] sm:$0xff]
    %v984 = vld [vmem:[%s9 + $0x390] sm:$0xff]
    %v985 = vld [vmem:[%s9 + $0x398] sm:$0xff]
    %v986 = vld [vmem:[%s9 + $0x3a0] sm:$0xff]
    %v987 = vld [vmem:[%s9 + $0x3a8] sm:$0xff]
    %v988 = vld [vmem:[%s9 + $0x3b0] sm:$0xff]
    %v989 = vld [vmem:[%s9 + $0x3b8] sm:$0xff]
    %v990 = vld [vmem:[%s9 + $0x3c0] sm:$0xff]
    %v991 = vld [vmem:[%s9 + $0x3c8] sm:$0xff]
    %v992 = vld [vmem:[%s9 + $0x3d0] sm:$0xff]
    %v993 = vld [vmem:[%s9 + $0x3d8] sm:$0xff]
    %v994 = vld [vmem:[%s9 + $0x3e0] sm:$0xff]
    %v995 = vld [vmem:[%s9 + $0x3e8] sm:$0xff]
    %v996 = vld [vmem:[%s9 + $0x3f0] sm:$0xff]
    %v997 = vld [vmem:[%s9 + $0x3f8] sm:$0xff]
    %v998 = vld [vmem:[%s10] sm:$0xf]
    %v1000 = vlaneseq
    %v1001 = vshrl.u32 %v1000, 7
    %v1002 = vsub.s32 0, %v1001
    %v1003 = vrot.slane %v998, %v1002
    %v1004 = vlaneseq
    %v1005 = vshrl.u32 %v1004, 7
    %v1006 = vsub.s32 1, %v1005
    %v1007 = vrot.slane %v998, %v1006
    %v1008 = vlaneseq
    %v1009 = vshrl.u32 %v1008, 7
    %v1010 = vsub.s32 2, %v1009
    %v1011 = vrot.slane %v998, %v1010
    %v1012 = vlaneseq
    %v1013 = vshrl.u32 %v1012, 7
    %v1014 = vsub.s32 3, %v1013
    %v1015 = vrot.slane %v998, %v1014
    %v1148 = vunpack.c.l.b16 %v870
    %v1149 = vunpack.c.h.b16 %v870
    %v1150 = vunpack.c.l.b16 %v871
    %v1151 = vunpack.c.h.b16 %v871
    %v1152 = vunpack.c.l.b16 %v872
    %v1153 = vunpack.c.h.b16 %v872
    %v1154 = vunpack.c.l.b16 %v873
    %v1155 = vunpack.c.h.b16 %v873
    %v1156 = vunpack.c.l.b16 %v874
    %v1157 = vunpack.c.h.b16 %v874
    %v1158 = vunpack.c.l.b16 %v875
    %v1159 = vunpack.c.h.b16 %v875
    %v1160 = vunpack.c.l.b16 %v876
    %v1161 = vunpack.c.h.b16 %v876
    %v1162 = vunpack.c.l.b16 %v877
    %v1163 = vunpack.c.h.b16 %v877
    %v1164 = vunpack.c.l.b16 %v878
    %v1165 = vunpack.c.h.b16 %v878
    %v1166 = vunpack.c.l.b16 %v879
    %v1167 = vunpack.c.h.b16 %v879
    %v1168 = vunpack.c.l.b16 %v880
    %v1169 = vunpack.c.h.b16 %v880
    %v1170 = vunpack.c.l.b16 %v881
    %v1171 = vunpack.c.h.b16 %v881
    %v1172 = vunpack.c.l.b16 %v882
    %v1173 = vunpack.c.h.b16 %v882
    %v1174 = vunpack.c.l.b16 %v883
    %v1175 = vunpack.c.h.b16 %v883
    %v1176 = vunpack.c.l.b16 %v884
    %v1177 = vunpack.c.h.b16 %v884
    %v1178 = vunpack.c.l.b16 %v885
    %v1179 = vunpack.c.h.b16 %v885
    %v1180 = vunpack.c.l.b16 %v886
    %v1181 = vunpack.c.h.b16 %v886
    %v1182 = vunpack.c.l.b16 %v887
    %v1183 = vunpack.c.h.b16 %v887
    %v1184 = vunpack.c.l.b16 %v888
    %v1185 = vunpack.c.h.b16 %v888
    %v1186 = vunpack.c.l.b16 %v889
    %v1187 = vunpack.c.h.b16 %v889
    %v1188 = vunpack.c.l.b16 %v890
    %v1189 = vunpack.c.h.b16 %v890
    %v1190 = vunpack.c.l.b16 %v891
    %v1191 = vunpack.c.h.b16 %v891
    %v1192 = vunpack.c.l.b16 %v892
    %v1193 = vunpack.c.h.b16 %v892
    %v1194 = vunpack.c.l.b16 %v893
    %v1195 = vunpack.c.h.b16 %v893
    %v1196 = vunpack.c.l.b16 %v894
    %v1197 = vunpack.c.h.b16 %v894
    %v1198 = vunpack.c.l.b16 %v895
    %v1199 = vunpack.c.h.b16 %v895
    %v1200 = vunpack.c.l.b16 %v896
    %v1201 = vunpack.c.h.b16 %v896
    %v1202 = vunpack.c.l.b16 %v897
    %v1203 = vunpack.c.h.b16 %v897
    %v1204 = vunpack.c.l.b16 %v898
    %v1205 = vunpack.c.h.b16 %v898
    %v1206 = vunpack.c.l.b16 %v899
    %v1207 = vunpack.c.h.b16 %v899
    %v1208 = vunpack.c.l.b16 %v900
    %v1209 = vunpack.c.h.b16 %v900
    %v1210 = vunpack.c.l.b16 %v901
    %v1211 = vunpack.c.h.b16 %v901
    %v1212 = vunpack.c.l.b16 %v902
    %v1213 = vunpack.c.h.b16 %v902
    %v1214 = vunpack.c.l.b16 %v903
    %v1215 = vunpack.c.h.b16 %v903
    %v1216 = vunpack.c.l.b16 %v904
    %v1217 = vunpack.c.h.b16 %v904
    %v1218 = vunpack.c.l.b16 %v905
    %v1219 = vunpack.c.h.b16 %v905
    %v1220 = vunpack.c.l.b16 %v906
    %v1221 = vunpack.c.h.b16 %v906
    %v1222 = vunpack.c.l.b16 %v907
    %v1223 = vunpack.c.h.b16 %v907
    %v1224 = vunpack.c.l.b16 %v908
    %v1225 = vunpack.c.h.b16 %v908
    %v1226 = vunpack.c.l.b16 %v909
    %v1227 = vunpack.c.h.b16 %v909
    %v1228 = vunpack.c.l.b16 %v910
    %v1229 = vunpack.c.h.b16 %v910
    %v1230 = vunpack.c.l.b16 %v911
    %v1231 = vunpack.c.h.b16 %v911
    %v1232 = vunpack.c.l.b16 %v912
    %v1233 = vunpack.c.h.b16 %v912
    %v1234 = vunpack.c.l.b16 %v913
    %v1235 = vunpack.c.h.b16 %v913
    %v1236 = vunpack.c.l.b16 %v914
    %v1237 = vunpack.c.h.b16 %v914
    %v1238 = vunpack.c.l.b16 %v915
    %v1239 = vunpack.c.h.b16 %v915
    %v1240 = vunpack.c.l.b16 %v916
    %v1241 = vunpack.c.h.b16 %v916
    %v1242 = vunpack.c.l.b16 %v917
    %v1243 = vunpack.c.h.b16 %v917
    %v1244 = vunpack.c.l.b16 %v918
    %v1245 = vunpack.c.h.b16 %v918
    %v1246 = vunpack.c.l.b16 %v919
    %v1247 = vunpack.c.h.b16 %v919
    %v1248 = vunpack.c.l.b16 %v920
    %v1249 = vunpack.c.h.b16 %v920
    %v1250 = vunpack.c.l.b16 %v921
    %v1251 = vunpack.c.h.b16 %v921
    %v1252 = vunpack.c.l.b16 %v922
    %v1253 = vunpack.c.h.b16 %v922
    %v1254 = vunpack.c.l.b16 %v923
    %v1255 = vunpack.c.h.b16 %v923
    %v1256 = vunpack.c.l.b16 %v924
    %v1257 = vunpack.c.h.b16 %v924
    %v1258 = vunpack.c.l.b16 %v925
    %v1259 = vunpack.c.h.b16 %v925
    %v1260 = vunpack.c.l.b16 %v926
    %v1261 = vunpack.c.h.b16 %v926
    %v1262 = vunpack.c.l.b16 %v927
    %v1263 = vunpack.c.h.b16 %v927
    %v1264 = vunpack.c.l.b16 %v928
    %v1265 = vunpack.c.h.b16 %v928
    %v1266 = vunpack.c.l.b16 %v929
    %v1267 = vunpack.c.h.b16 %v929
    %v1268 = vunpack.c.l.b16 %v930
    %v1269 = vunpack.c.h.b16 %v930
    %v1270 = vunpack.c.l.b16 %v931
    %v1271 = vunpack.c.h.b16 %v931
    %v1272 = vunpack.c.l.b16 %v932
    %v1273 = vunpack.c.h.b16 %v932
    %v1274 = vunpack.c.l.b16 %v933
    %v1275 = vunpack.c.h.b16 %v933
    %v1276 = vunpack.c.l.b16 %v934
    %v1277 = vunpack.c.h.b16 %v934
    %v1278 = vunpack.c.l.b16 %v935
    %v1279 = vunpack.c.h.b16 %v935
    %v1280 = vunpack.c.l.b16 %v936
    %v1281 = vunpack.c.h.b16 %v936
    %v1282 = vunpack.c.l.b16 %v937
    %v1283 = vunpack.c.h.b16 %v937
    %v1284 = vunpack.c.l.b16 %v938
    %v1285 = vunpack.c.h.b16 %v938
    %v1286 = vunpack.c.l.b16 %v939
    %v1287 = vunpack.c.h.b16 %v939
    %v1288 = vunpack.c.l.b16 %v940
    %v1289 = vunpack.c.h.b16 %v940
    %v1290 = vunpack.c.l.b16 %v941
    %v1291 = vunpack.c.h.b16 %v941
    %v1292 = vunpack.c.l.b16 %v942
    %v1293 = vunpack.c.h.b16 %v942
    %v1294 = vunpack.c.l.b16 %v943
    %v1295 = vunpack.c.h.b16 %v943
    %v1296 = vunpack.c.l.b16 %v944
    %v1297 = vunpack.c.h.b16 %v944
    %v1298 = vunpack.c.l.b16 %v945
    %v1299 = vunpack.c.h.b16 %v945
    %v1300 = vunpack.c.l.b16 %v946
    %v1301 = vunpack.c.h.b16 %v946
    %v1302 = vunpack.c.l.b16 %v947
    %v1303 = vunpack.c.h.b16 %v947
    %v1304 = vunpack.c.l.b16 %v948
    %v1305 = vunpack.c.h.b16 %v948
    %v1306 = vunpack.c.l.b16 %v949
    %v1307 = vunpack.c.h.b16 %v949
    %v1308 = vunpack.c.l.b16 %v950
    %v1309 = vunpack.c.h.b16 %v950
    %v1310 = vunpack.c.l.b16 %v951
    %v1311 = vunpack.c.h.b16 %v951
    %v1312 = vunpack.c.l.b16 %v952
    %v1313 = vunpack.c.h.b16 %v952
    %v1314 = vunpack.c.l.b16 %v953
    %v1315 = vunpack.c.h.b16 %v953
    %v1316 = vunpack.c.l.b16 %v954
    %v1317 = vunpack.c.h.b16 %v954
    %v1318 = vunpack.c.l.b16 %v955
    %v1319 = vunpack.c.h.b16 %v955
    %v1320 = vunpack.c.l.b16 %v956
    %v1321 = vunpack.c.h.b16 %v956
    %v1322 = vunpack.c.l.b16 %v957
    %v1323 = vunpack.c.h.b16 %v957
    %v1324 = vunpack.c.l.b16 %v958
    %v1325 = vunpack.c.h.b16 %v958
    %v1326 = vunpack.c.l.b16 %v959
    %v1327 = vunpack.c.h.b16 %v959
    %v1328 = vunpack.c.l.b16 %v960
    %v1329 = vunpack.c.h.b16 %v960
    %v1330 = vunpack.c.l.b16 %v961
    %v1331 = vunpack.c.h.b16 %v961
    %v1332 = vunpack.c.l.b16 %v962
    %v1333 = vunpack.c.h.b16 %v962
    %v1334 = vunpack.c.l.b16 %v963
    %v1335 = vunpack.c.h.b16 %v963
    %v1336 = vunpack.c.l.b16 %v964
    %v1337 = vunpack.c.h.b16 %v964
    %v1338 = vunpack.c.l.b16 %v965
    %v1339 = vunpack.c.h.b16 %v965
    %v1340 = vunpack.c.l.b16 %v966
    %v1341 = vunpack.c.h.b16 %v966
    %v1342 = vunpack.c.l.b16 %v967
    %v1343 = vunpack.c.h.b16 %v967
    %v1344 = vunpack.c.l.b16 %v968
    %v1345 = vunpack.c.h.b16 %v968
    %v1346 = vunpack.c.l.b16 %v969
    %v1347 = vunpack.c.h.b16 %v969
    %v1348 = vunpack.c.l.b16 %v970
    %v1349 = vunpack.c.h.b16 %v970
    %v1350 = vunpack.c.l.b16 %v971
    %v1351 = vunpack.c.h.b16 %v971
    %v1352 = vunpack.c.l.b16 %v972
    %v1353 = vunpack.c.h.b16 %v972
    %v1354 = vunpack.c.l.b16 %v973
    %v1355 = vunpack.c.h.b16 %v973
    %v1356 = vunpack.c.l.b16 %v974
    %v1357 = vunpack.c.h.b16 %v974
    %v1358 = vunpack.c.l.b16 %v975
    %v1359 = vunpack.c.h.b16 %v975
    %v1360 = vunpack.c.l.b16 %v976
    %v1361 = vunpack.c.h.b16 %v976
    %v1362 = vunpack.c.l.b16 %v977
    %v1363 = vunpack.c.h.b16 %v977
    %v1364 = vunpack.c.l.b16 %v978
    %v1365 = vunpack.c.h.b16 %v978
    %v1366 = vunpack.c.l.b16 %v979
    %v1367 = vunpack.c.h.b16 %v979
    %v1368 = vunpack.c.l.b16 %v980
    %v1369 = vunpack.c.h.b16 %v980
    %v1370 = vunpack.c.l.b16 %v981
    %v1371 = vunpack.c.h.b16 %v981
    %v1372 = vunpack.c.l.b16 %v982
    %v1373 = vunpack.c.h.b16 %v982
    %v1374 = vunpack.c.l.b16 %v983
    %v1375 = vunpack.c.h.b16 %v983
    %v1376 = vunpack.c.l.b16 %v984
    %v1377 = vunpack.c.h.b16 %v984
    %v1378 = vunpack.c.l.b16 %v985
    %v1379 = vunpack.c.h.b16 %v985
    %v1380 = vunpack.c.l.b16 %v986
    %v1381 = vunpack.c.h.b16 %v986
    %v1382 = vunpack.c.l.b16 %v987
    %v1383 = vunpack.c.h.b16 %v987
    %v1384 = vunpack.c.l.b16 %v988
    %v1385 = vunpack.c.h.b16 %v988
    %v1386 = vunpack.c.l.b16 %v989
    %v1387 = vunpack.c.h.b16 %v989
    %v1388 = vunpack.c.l.b16 %v990
    %v1389 = vunpack.c.h.b16 %v990
    %v1390 = vunpack.c.l.b16 %v991
    %v1391 = vunpack.c.h.b16 %v991
    %v1392 = vunpack.c.l.b16 %v992
    %v1393 = vunpack.c.h.b16 %v992
    %v1394 = vunpack.c.l.b16 %v993
    %v1395 = vunpack.c.h.b16 %v993
    %v1396 = vunpack.c.l.b16 %v994
    %v1397 = vunpack.c.h.b16 %v994
    %v1398 = vunpack.c.l.b16 %v995
    %v1399 = vunpack.c.h.b16 %v995
    %v1400 = vunpack.c.l.b16 %v996
    %v1401 = vunpack.c.h.b16 %v996
    %v1402 = vunpack.c.l.b16 %v997
    %v1403 = vunpack.c.h.b16 %v997
    %v1404 = vpack.c.b16 %v1152, %v1148
    %v1405 = vpack.c.b16 %v1153, %v1149
    %v1406 = vpack.c.b16 %v1154, %v1150
    %v1407 = vpack.c.b16 %v1155, %v1151
    %v1408 = vpack.c.b16 %v1160, %v1156
    %v1409 = vpack.c.b16 %v1161, %v1157
    %v1410 = vpack.c.b16 %v1162, %v1158
    %v1411 = vpack.c.b16 %v1163, %v1159
    %v1412 = vpack.c.b16 %v1168, %v1164
    %v1413 = vpack.c.b16 %v1169, %v1165
    %v1414 = vpack.c.b16 %v1170, %v1166
    %v1415 = vpack.c.b16 %v1171, %v1167
    %v1416 = vpack.c.b16 %v1176, %v1172
    %v1417 = vpack.c.b16 %v1177, %v1173
    %v1418 = vpack.c.b16 %v1178, %v1174
    %v1419 = vpack.c.b16 %v1179, %v1175
    %v1420 = vpack.c.b16 %v1184, %v1180
    %v1421 = vpack.c.b16 %v1185, %v1181
    %v1422 = vpack.c.b16 %v1186, %v1182
    %v1423 = vpack.c.b16 %v1187, %v1183
    %v1424 = vpack.c.b16 %v1192, %v1188
    %v1425 = vpack.c.b16 %v1193, %v1189
    %v1426 = vpack.c.b16 %v1194, %v1190
    %v1427 = vpack.c.b16 %v1195, %v1191
    %v1428 = vpack.c.b16 %v1200, %v1196
    %v1429 = vpack.c.b16 %v1201, %v1197
    %v1430 = vpack.c.b16 %v1202, %v1198
    %v1431 = vpack.c.b16 %v1203, %v1199
    %v1432 = vpack.c.b16 %v1208, %v1204
    %v1433 = vpack.c.b16 %v1209, %v1205
    %v1434 = vpack.c.b16 %v1210, %v1206
    %v1435 = vpack.c.b16 %v1211, %v1207
    %v1436 = vpack.c.b16 %v1216, %v1212
    %v1437 = vpack.c.b16 %v1217, %v1213
    %v1438 = vpack.c.b16 %v1218, %v1214
    %v1439 = vpack.c.b16 %v1219, %v1215
    %v1440 = vpack.c.b16 %v1224, %v1220
    %v1441 = vpack.c.b16 %v1225, %v1221
    %v1442 = vpack.c.b16 %v1226, %v1222
    %v1443 = vpack.c.b16 %v1227, %v1223
    %v1444 = vpack.c.b16 %v1232, %v1228
    %v1445 = vpack.c.b16 %v1233, %v1229
    %v1446 = vpack.c.b16 %v1234, %v1230
    %v1447 = vpack.c.b16 %v1235, %v1231
    %v1448 = vpack.c.b16 %v1240, %v1236
    %v1449 = vpack.c.b16 %v1241, %v1237
    %v1450 = vpack.c.b16 %v1242, %v1238
    %v1451 = vpack.c.b16 %v1243, %v1239
    %v1452 = vpack.c.b16 %v1248, %v1244
    %v1453 = vpack.c.b16 %v1249, %v1245
    %v1454 = vpack.c.b16 %v1250, %v1246
    %v1455 = vpack.c.b16 %v1251, %v1247
    %v1456 = vpack.c.b16 %v1256, %v1252
    %v1457 = vpack.c.b16 %v1257, %v1253
    %v1458 = vpack.c.b16 %v1258, %v1254
    %v1459 = vpack.c.b16 %v1259, %v1255
    %v1460 = vpack.c.b16 %v1264, %v1260
    %v1461 = vpack.c.b16 %v1265, %v1261
    %v1462 = vpack.c.b16 %v1266, %v1262
    %v1463 = vpack.c.b16 %v1267, %v1263
    %v1464 = vpack.c.b16 %v1272, %v1268
    %v1465 = vpack.c.b16 %v1273, %v1269
    %v1466 = vpack.c.b16 %v1274, %v1270
    %v1467 = vpack.c.b16 %v1275, %v1271
    %v1468 = vpack.c.b16 %v1280, %v1276
    %v1469 = vpack.c.b16 %v1281, %v1277
    %v1470 = vpack.c.b16 %v1282, %v1278
    %v1471 = vpack.c.b16 %v1283, %v1279
    %v1472 = vpack.c.b16 %v1288, %v1284
    %v1473 = vpack.c.b16 %v1289, %v1285
    %v1474 = vpack.c.b16 %v1290, %v1286
    %v1475 = vpack.c.b16 %v1291, %v1287
    %v1476 = vpack.c.b16 %v1296, %v1292
    %v1477 = vpack.c.b16 %v1297, %v1293
    %v1478 = vpack.c.b16 %v1298, %v1294
    %v1479 = vpack.c.b16 %v1299, %v1295
    %v1480 = vpack.c.b16 %v1304, %v1300
    %v1481 = vpack.c.b16 %v1305, %v1301
    %v1482 = vpack.c.b16 %v1306, %v1302
    %v1483 = vpack.c.b16 %v1307, %v1303
    %v1484 = vpack.c.b16 %v1312, %v1308
    %v1485 = vpack.c.b16 %v1313, %v1309
    %v1486 = vpack.c.b16 %v1314, %v1310
    %v1487 = vpack.c.b16 %v1315, %v1311
    %v1488 = vpack.c.b16 %v1320, %v1316
    %v1489 = vpack.c.b16 %v1321, %v1317
    %v1490 = vpack.c.b16 %v1322, %v1318
    %v1491 = vpack.c.b16 %v1323, %v1319
    %v1492 = vpack.c.b16 %v1328, %v1324
    %v1493 = vpack.c.b16 %v1329, %v1325
    %v1494 = vpack.c.b16 %v1330, %v1326
    %v1495 = vpack.c.b16 %v1331, %v1327
    %v1496 = vpack.c.b16 %v1336, %v1332
    %v1497 = vpack.c.b16 %v1337, %v1333
    %v1498 = vpack.c.b16 %v1338, %v1334
    %v1499 = vpack.c.b16 %v1339, %v1335
    %v1500 = vpack.c.b16 %v1344, %v1340
    %v1501 = vpack.c.b16 %v1345, %v1341
    %v1502 = vpack.c.b16 %v1346, %v1342
    %v1503 = vpack.c.b16 %v1347, %v1343
    %v1504 = vpack.c.b16 %v1352, %v1348
    %v1505 = vpack.c.b16 %v1353, %v1349
    %v1506 = vpack.c.b16 %v1354, %v1350
    %v1507 = vpack.c.b16 %v1355, %v1351
    %v1508 = vpack.c.b16 %v1360, %v1356
    %v1509 = vpack.c.b16 %v1361, %v1357
    %v1510 = vpack.c.b16 %v1362, %v1358
    %v1511 = vpack.c.b16 %v1363, %v1359
    %v1512 = vpack.c.b16 %v1368, %v1364
    %v1513 = vpack.c.b16 %v1369, %v1365
    %v1514 = vpack.c.b16 %v1370, %v1366
    %v1515 = vpack.c.b16 %v1371, %v1367
    %v1516 = vpack.c.b16 %v1376, %v1372
    %v1517 = vpack.c.b16 %v1377, %v1373
    %v1518 = vpack.c.b16 %v1378, %v1374
    %v1519 = vpack.c.b16 %v1379, %v1375
    %v1520 = vpack.c.b16 %v1384, %v1380
    %v1521 = vpack.c.b16 %v1385, %v1381
    %v1522 = vpack.c.b16 %v1386, %v1382
    %v1523 = vpack.c.b16 %v1387, %v1383
    %v1524 = vpack.c.b16 %v1392, %v1388
    %v1525 = vpack.c.b16 %v1393, %v1389
    %v1526 = vpack.c.b16 %v1394, %v1390
    %v1527 = vpack.c.b16 %v1395, %v1391
    %v1528 = vpack.c.b16 %v1400, %v1396
    %v1529 = vpack.c.b16 %v1401, %v1397
    %v1530 = vpack.c.b16 %v1402, %v1398
    %v1531 = vpack.c.b16 %v1403, %v1399
    %1660 = vmatprep.subr.bf16.mxu0 %v1433
    %1661 = vmatpush1.bf16.msra.mxu0 %v1432
    %1662 = vmatprep.subr.bf16.mxu0 %v1429
    %1663 = vmatpush1.bf16.msra.mxu0 %v1428
    %1664 = vmatprep.subr.bf16.mxu0 %v1425
    %1665 = vmatpush1.bf16.msra.mxu0 %v1424
    %1666 = vmatprep.subr.bf16.mxu0 %v1421
    %1667 = vmatpush1.bf16.msra.mxu0 %v1420
    %1668 = vmatprep.subr.bf16.mxu0 %v1417
    %1669 = vmatpush1.bf16.msra.mxu0 %v1416
    %1670 = vmatprep.subr.bf16.mxu0 %v1413
    %1671 = vmatpush1.bf16.msra.mxu0 %v1412
    %1672 = vmatprep.subr.bf16.mxu0 %v1409
    %1673 = vmatpush1.bf16.msra.mxu0 %v1408
    %1674 = vmatprep.subr.bf16.mxu0 %v1405
    %1675 = vmatpush1.bf16.msra.mxu0 %v1404
    %1676 = vmatprep.subr.bf16.mxu0 %v1465
    %1677 = vmatpush2.bf16.msra.mxu0 %v1464
    %1678 = vmatprep.subr.bf16.mxu0 %v1461
    %1679 = vmatpush2.bf16.msra.mxu0 %v1460
    %1680 = vmatprep.subr.bf16.mxu0 %v1457
    %1681 = vmatpush2.bf16.msra.mxu0 %v1456
    %1682 = vmatprep.subr.bf16.mxu0 %v1453
    %1683 = vmatpush2.bf16.msra.mxu0 %v1452
    %1684 = vmatprep.subr.bf16.mxu0 %v1449
    %1685 = vmatpush2.bf16.msra.mxu0 %v1448
    %1686 = vmatprep.subr.bf16.mxu0 %v1445
    %1687 = vmatpush2.bf16.msra.mxu0 %v1444
    %1688 = vmatprep.subr.bf16.mxu0 %v1441
    %1689 = vmatpush2.bf16.msra.mxu0 %v1440
    %1690 = vmatprep.subr.bf16.mxu0 %v1437
    %1691 = vmatpush2.bf16.msra.mxu0 %v1436
    %1692 = vmatprep.mubr.bf16.mxu0 %v867
    %1693 = vmatmul.mubr.bf16.gmra.mxu0 %v866
    %v1694 = vpop.f32.mrf.mxu0
    %v1695 = vadd.f32 %v1003, %v1694
    %v1696 = vpop.f32.mrf.mxu0
    %v1697 = vadd.f32 %v1007, %v1696
    %v1698 = vpop.f32.mrf.mxu0
    %v1699 = vadd.f32 %v1003, %v1698
    %v1700 = vpop.f32.mrf.mxu0
    %v1701 = vadd.f32 %v1007, %v1700
    %1702 = vdwg.mxu0
    %1703 = vmatprep.subr.bf16.mxu0 %v1497
    %1704 = vmatpush1.bf16.msra.mxu0 %v1496
    %1705 = vmatprep.subr.bf16.mxu0 %v1493
    %1706 = vmatpush1.bf16.msra.mxu0 %v1492
    %1707 = vmatprep.subr.bf16.mxu0 %v1489
    %1708 = vmatpush1.bf16.msra.mxu0 %v1488
    %1709 = vmatprep.subr.bf16.mxu0 %v1485
    %1710 = vmatpush1.bf16.msra.mxu0 %v1484
    %1711 = vmatprep.subr.bf16.mxu0 %v1481
    %1712 = vmatpush1.bf16.msra.mxu0 %v1480
    %1713 = vmatprep.subr.bf16.mxu0 %v1477
    %1714 = vmatpush1.bf16.msra.mxu0 %v1476
    %1715 = vmatprep.subr.bf16.mxu0 %v1473
    %1716 = vmatpush1.bf16.msra.mxu0 %v1472
    %1717 = vmatprep.subr.bf16.mxu0 %v1469
    %1718 = vmatpush1.bf16.msra.mxu0 %v1468
    %1719 = vmatprep.subr.bf16.mxu0 %v1529
    %1720 = vmatpush2.bf16.msra.mxu0 %v1528
    %1721 = vmatprep.subr.bf16.mxu0 %v1525
    %1722 = vmatpush2.bf16.msra.mxu0 %v1524
    %1723 = vmatprep.subr.bf16.mxu0 %v1521
    %1724 = vmatpush2.bf16.msra.mxu0 %v1520
    %1725 = vmatprep.subr.bf16.mxu0 %v1517
    %1726 = vmatpush2.bf16.msra.mxu0 %v1516
    %1727 = vmatprep.subr.bf16.mxu0 %v1513
    %1728 = vmatpush2.bf16.msra.mxu0 %v1512
    %1729 = vmatprep.subr.bf16.mxu0 %v1509
    %1730 = vmatpush2.bf16.msra.mxu0 %v1508
    %1731 = vmatprep.subr.bf16.mxu0 %v1505
    %1732 = vmatpush2.bf16.msra.mxu0 %v1504
    %1733 = vmatprep.subr.bf16.mxu0 %v1501
    %1734 = vmatpush2.bf16.msra.mxu0 %v1500
    %1735 = vmatprep.mubr.bf16.mxu0 %v869
    %1736 = vmatmul.mubr.bf16.gmra.mxu0 %v868
    %v1737 = vpop.f32.mrf.mxu0
    %v1738 = vadd.f32 %v1695, %v1737
    %v1739 = vpop.f32.mrf.mxu0
    %v1740 = vadd.f32 %v1697, %v1739
    %v1741 = vpop.f32.mrf.mxu0
    %v1742 = vadd.f32 %v1699, %v1741
    %v1743 = vpop.f32.mrf.mxu0
    %v1744 = vadd.f32 %v1701, %v1743
    %1745 = vdwg.mxu0
    %1746 = vmatprep.subr.bf16.mxu0 %v1435
    %1747 = vmatpush1.bf16.msra.mxu0 %v1434
    %1748 = vmatprep.subr.bf16.mxu0 %v1431
    %1749 = vmatpush1.bf16.msra.mxu0 %v1430
    %1750 = vmatprep.subr.bf16.mxu0 %v1427
    %1751 = vmatpush1.bf16.msra.mxu0 %v1426
    %1752 = vmatprep.subr.bf16.mxu0 %v1423
    %1753 = vmatpush1.bf16.msra.mxu0 %v1422
    %1754 = vmatprep.subr.bf16.mxu0 %v1419
    %1755 = vmatpush1.bf16.msra.mxu0 %v1418
    %1756 = vmatprep.subr.bf16.mxu0 %v1415
    %1757 = vmatpush1.bf16.msra.mxu0 %v1414
    %1758 = vmatprep.subr.bf16.mxu0 %v1411
    %1759 = vmatpush1.bf16.msra.mxu0 %v1410
    %1760 = vmatprep.subr.bf16.mxu0 %v1407
    %1761 = vmatpush1.bf16.msra.mxu0 %v1406
    %1762 = vmatprep.subr.bf16.mxu0 %v1467
    %1763 = vmatpush2.bf16.msra.mxu0 %v1466
    %1764 = vmatprep.subr.bf16.mxu0 %v1463
    %1765 = vmatpush2.bf16.msra.mxu0 %v1462
    %1766 = vmatprep.subr.bf16.mxu0 %v1459
    %1767 = vmatpush2.bf16.msra.mxu0 %v1458
    %1768 = vmatprep.subr.bf16.mxu0 %v1455
    %1769 = vmatpush2.bf16.msra.mxu0 %v1454
    %1770 = vmatprep.subr.bf16.mxu0 %v1451
    %1771 = vmatpush2.bf16.msra.mxu0 %v1450
    %1772 = vmatprep.subr.bf16.mxu0 %v1447
    %1773 = vmatpush2.bf16.msra.mxu0 %v1446
    %1774 = vmatprep.subr.bf16.mxu0 %v1443
    %1775 = vmatpush2.bf16.msra.mxu0 %v1442
    %1776 = vmatprep.subr.bf16.mxu0 %v1439
    %1777 = vmatpush2.bf16.msra.mxu0 %v1438
    %1778 = vmatprep.mubr.bf16.mxu0 %v867
    %1779 = vmatmul.mubr.bf16.gmra.mxu0 %v866
    %v1780 = vpop.f32.mrf.mxu0
    %v1781 = vadd.f32 %v1011, %v1780
    %v1782 = vpop.f32.mrf.mxu0
    %v1783 = vadd.f32 %v1015, %v1782
    %v1784 = vpop.f32.mrf.mxu0
    %v1785 = vadd.f32 %v1011, %v1784
    %v1786 = vpop.f32.mrf.mxu0
    %v1787 = vadd.f32 %v1015, %v1786
    %1788 = vdwg.mxu0
    %1789 = vmatprep.subr.bf16.mxu0 %v1499
    %1790 = vmatpush1.bf16.msra.mxu0 %v1498
    %1791 = vmatprep.subr.bf16.mxu0 %v1495
    %1792 = vmatpush1.bf16.msra.mxu0 %v1494
    %1793 = vmatprep.subr.bf16.mxu0 %v1491
    %1794 = vmatpush1.bf16.msra.mxu0 %v1490
    %1795 = vmatprep.subr.bf16.mxu0 %v1487
    %1796 = vmatpush1.bf16.msra.mxu0 %v1486
    %1797 = vmatprep.subr.bf16.mxu0 %v1483
    %1798 = vmatpush1.bf16.msra.mxu0 %v1482
    %1799 = vmatprep.subr.bf16.mxu0 %v1479
    %1800 = vmatpush1.bf16.msra.mxu0 %v1478
    %1801 = vmatprep.subr.bf16.mxu0 %v1475
    %1802 = vmatpush1.bf16.msra.mxu0 %v1474
    %1803 = vmatprep.subr.bf16.mxu0 %v1471
    %1804 = vmatpush1.bf16.msra.mxu0 %v1470
    %1805 = vmatprep.subr.bf16.mxu0 %v1531
    %1806 = vmatpush2.bf16.msra.mxu0 %v1530
    %1807 = vmatprep.subr.bf16.mxu0 %v1527
    %1808 = vmatpush2.bf16.msra.mxu0 %v1526
    %1809 = vmatprep.subr.bf16.mxu0 %v1523
    %1810 = vmatpush2.bf16.msra.mxu0 %v1522
    %1811 = vmatprep.subr.bf16.mxu0 %v1519
    %1812 = vmatpush2.bf16.msra.mxu0 %v1518
    %1813 = vmatprep.subr.bf16.mxu0 %v1515
    %1814 = vmatpush2.bf16.msra.mxu0 %v1514
    %1815 = vmatprep.subr.bf16.mxu0 %v1511
    %1816 = vmatpush2.bf16.msra.mxu0 %v1510
    %1817 = vmatprep.subr.bf16.mxu0 %v1507
    %1818 = vmatpush2.bf16.msra.mxu0 %v1506
    %1819 = vmatprep.subr.bf16.mxu0 %v1503
    %1820 = vmatpush2.bf16.msra.mxu0 %v1502
    %1821 = vmatprep.mubr.bf16.mxu0 %v869
    %1822 = vmatmul.mubr.bf16.gmra.mxu0 %v868
    %v1823 = vpop.f32.mrf.mxu0
    %v1824 = vadd.f32 %v1781, %v1823
    %v1825 = vpop.f32.mrf.mxu0
    %v1826 = vadd.f32 %v1783, %v1825
    %v1827 = vpop.f32.mrf.mxu0
    %v1828 = vadd.f32 %v1785, %v1827
    %v1829 = vpop.f32.mrf.mxu0
    %v1830 = vadd.f32 %v1787, %v1829
    %1831 = vdwg.mxu0
    %v1832 = vmul.f32 %v1738, %v1738
    %v1833 = vmul.f32 %v1740, %v1740
    %v1834 = vmul.f32 %v1824, %v1824
    %v1835 = vmul.f32 %v1826, %v1826
    %v1836 = vmul.f32 %v1742, %v1742
    %v1837 = vmul.f32 %v1744, %v1744
    %v1838 = vmul.f32 %v1828, %v1828
    %v1839 = vmul.f32 %v1830, %v1830
    %v1840 = vadd.f32 %v1832, %v1833
    %v1841 = vadd.f32 %v1840, %v1834
    %v1842 = vadd.f32 %v1841, %v1835
    %1843 = vadd.xlane.f32.xlu0 %v1842
    %v1844 = vpop.xlane.xlu0 %1843
    %v1845 = vadd.f32 %v1836, %v1837
    %v1846 = vadd.f32 %v1845, %v1838
    %v1847 = vadd.f32 %v1846, %v1839
    %1848 = vadd.xlane.f32.xlu0 %v1847
    %v1849 = vpop.xlane.xlu0 %1848
    %v1850 = vadd.f32 %v1844, 1e-12
    %v1851 = vadd.f32 %v1849, 1e-12
    %v1852 = vrsqrt.pop %v1850
    %v1853 = vrsqrt.pop %v1851
    %v1854 = vmul.f32 %v1738, %v1852
    %v1855 = vmul.f32 %v1740, %v1852
    %v1856 = vmul.f32 %v1824, %v1852
    %v1857 = vmul.f32 %v1826, %v1852
    %v1858 = vmul.f32 %v1742, %v1853
    %v1859 = vmul.f32 %v1744, %v1853
    %v1860 = vmul.f32 %v1828, %v1853
    %v1861 = vmul.f32 %v1830, %v1853
    %v1862 = vld [vmem:[#allocation2] sm:$0x1]
    %v1863 = vmul.f32 %v1862, 1.442695
    %v1864 = vpow.pop %v1863
    %v1865 = vpack.c.bf16 %v725, %v725
    %v1866 = vpack.c.bf16 %v726, %v726
    %v1867 = vpack.c.bf16 %v727, %v727
    %v1868 = vpack.c.bf16 %v728, %v728
    %v1869 = vpack.c.bf16 %v1858, %v1854
    %v1870 = vpack.c.bf16 %v1859, %v1855
    %v1871 = vpack.c.bf16 %v1860, %v1856
    %v1872 = vpack.c.bf16 %v1861, %v1857
    %1873 = vmatprep.subr.bf16.mxu0 0
    %1874 = vmatpush1.bf16.xpose.msra.mxu0 0
    %1875 = vmatprep.subr.bf16.mxu0 0
    %1876 = vmatpush1.bf16.xpose.msra.mxu0 0
    %1877 = vmatprep.subr.bf16.mxu0 0
    %1878 = vmatpush1.bf16.xpose.msra.mxu0 0
    %1879 = vmatprep.subr.bf16.mxu0 0
    %1880 = vmatpush1.bf16.xpose.msra.mxu0 0
    %1881 = vmatprep.subr.bf16.mxu0 0
    %1882 = vmatpush1.bf16.xpose.msra.mxu0 0
    %1883 = vmatprep.subr.bf16.mxu0 0
    %1884 = vmatpush1.bf16.xpose.msra.mxu0 0
    %1885 = vmatprep.subr.bf16.mxu0 0
    %1886 = vmatpush1.bf16.xpose.msra.mxu0 0
    %1887 = vmatprep.subr.bf16.mxu0 %v1870
    %1888 = vmatpush1.bf16.xpose.msra.mxu0 %v1869
    %1889 = vmatprep.subr.bf16.mxu0 0
    %1890 = vmatpush2.bf16.xpose.msra.mxu0 0
    %1891 = vmatprep.subr.bf16.mxu0 0
    %1892 = vmatpush2.bf16.xpose.msra.mxu0 0
    %1893 = vmatprep.subr.bf16.mxu0 0
    %1894 = vmatpush2.bf16.xpose.msra.mxu0 0
    %1895 = vmatprep.subr.bf16.mxu0 0
    %1896 = vmatpush2.bf16.xpose.msra.mxu0 0
    %1897 = vmatprep.subr.bf16.mxu0 0
    %1898 = vmatpush2.bf16.xpose.msra.mxu0 0
    %1899 = vmatprep.subr.bf16.mxu0 0
    %1900 = vmatpush2.bf16.xpose.msra.mxu0 0
    %1901 = vmatprep.subr.bf16.mxu0 0
    %1902 = vmatpush2.bf16.xpose.msra.mxu0 0
    %1903 = vmatprep.subr.bf16.mxu0 0
    %1904 = vmatpush2.bf16.xpose.msra.mxu0 0
    %1905 = vmatprep.mubr.bf16.mxu0 %v1866
    %1906 = vmatmul.mubr.bf16.gmra.mxu0 %v1865
    %v1907 = vpop.f32.mrf.mxu0
    %v1908 = vadd.f32 0.0, %v1907
    %v1909 = vpop.f32.mrf.mxu0
    %v1910 = vpop.f32.mrf.mxu0
    %v1911 = vpop.f32.mrf.mxu0
    %1912 = vdwg.mxu0
    %1913 = vmatprep.subr.bf16.mxu0 0
    %1914 = vmatpush1.bf16.xpose.msra.mxu0 0
    %1915 = vmatprep.subr.bf16.mxu0 0
    %1916 = vmatpush1.bf16.xpose.msra.mxu0 0
    %1917 = vmatprep.subr.bf16.mxu0 0
    %1918 = vmatpush1.bf16.xpose.msra.mxu0 0
    %1919 = vmatprep.subr.bf16.mxu0 0
    %1920 = vmatpush1.bf16.xpose.msra.mxu0 0
    %1921 = vmatprep.subr.bf16.mxu0 0
    %1922 = vmatpush1.bf16.xpose.msra.mxu0 0
    %1923 = vmatprep.subr.bf16.mxu0 0
    %1924 = vmatpush1.bf16.xpose.msra.mxu0 0
    %1925 = vmatprep.subr.bf16.mxu0 0
    %1926 = vmatpush1.bf16.xpose.msra.mxu0 0
    %1927 = vmatprep.subr.bf16.mxu0 %v1872
    %1928 = vmatpush1.bf16.xpose.msra.mxu0 %v1871
    %1929 = vmatprep.subr.bf16.mxu0 0
    %1930 = vmatpush2.bf16.xpose.msra.mxu0 0
    %1931 = vmatprep.subr.bf16.mxu0 0
    %1932 = vmatpush2.bf16.xpose.msra.mxu0 0
    %1933 = vmatprep.subr.bf16.mxu0 0
    %1934 = vmatpush2.bf16.xpose.msra.mxu0 0
    %1935 = vmatprep.subr.bf16.mxu0 0
    %1936 = vmatpush2.bf16.xpose.msra.mxu0 0
    %1937 = vmatprep.subr.bf16.mxu0 0
    %1938 = vmatpush2.bf16.xpose.msra.mxu0 0
    %1939 = vmatprep.subr.bf16.mxu0 0
    %1940 = vmatpush2.bf16.xpose.msra.mxu0 0
    %1941 = vmatprep.subr.bf16.mxu0 0
    %1942 = vmatpush2.bf16.xpose.msra.mxu0 0
    %1943 = vmatprep.subr.bf16.mxu0 0
    %1944 = vmatpush2.bf16.xpose.msra.mxu0 0
    %1945 = vmatprep.mubr.bf16.mxu0 %v1868
    %1946 = vmatmul.mubr.bf16.gmra.mxu0 %v1867
    %v1947 = vpop.f32.mrf.mxu0
    %v1948 = vadd.f32 %v1908, %v1947
    %v1949 = vpop.f32.mrf.mxu0
    %v1950 = vpop.f32.mrf.mxu0
    %v1951 = vpop.f32.mrf.mxu0
    %1952 = vdwg.mxu0
    %v1954 = vlaneseq
    %v1955 = vshrl.u32 %v1954, 7
    %v1956 = vsub.s32 0, %v1955
    %v1957 = vrot.slane %v1864, %v1956
    %1958 = vset.pattern.permute.xlu0 0
    %1959 = vperm.xlu0 %1958, %v1957
    %v1960 = vpop.permute.xlu0 %1959
    %v1962 = vmul.f32 %v1960, %v1948
    %vm1963 = vcmask 130048
    %1964 = vst.msk [vmem:[#allocation6] sm:$0xff] %vm1963, %v1962
    %v1965 = vsel %vm1963, %v1962, -inf
    %1966 = vmax.xlane.f32.xlu0 %v1965
    %v1967 = vpop.xlane.xlu0 %1966
    %v1968 = vsub.f32 %v1962, %v1967
    %v1969 = vmul.f32 %v1968, 1.442695
    %v1970 = vpow.pop %v1969
    %v1971 = vsel %vm1963, %v1970, 0.0
    %1972 = vadd.xlane.f32.xlu0 %v1971
    %v1973 = vpop.xlane.xlu0 %1972
    %v1974 = vlog2.pop %v1973
    %v1975 = vmul.f32 %v1974, 0.6931472
    %v1976 = vsub.f32 %v1968, %v1975
    %v1977 = vlaneseq
    %v1978 = vand.u32 %v1977, 127
    %v1979 = vld [vmem:[%s11] sm:$0xff]
    %1980 = vset.pattern.permute.xlu0 0
    %1981 = vperm.xlu0 %1980, %v1979
    %v1982 = vpop.permute.xlu0 %1981
    %vm1983 = vcmp.eq.s32.totalorder %v1978, %v1982
    %v1984 = vsel %vm1983, 1, 0
    %v1985 = vcvt.s32.f32 %v1984
    %v1986 = vmul.f32 %v1985, %v1976
    %v1987 = vsel %vm1963, %v1986, 0.0
    %1988 = vadd.xlane.f32.xlu0 %v1987
    %v1989 = vpop.xlane.xlu0 %1988
    %v1990 = vsub.f32 0.0, %v1989
    %v1991 = vrot.slane %v1990, 4
    %v1992 = vadd.f32 %v1990, %v1991
    %v1993 = vrot.slane %v1992, 2
    %v1994 = vadd.f32 %v1992, %v1993
    %v1995 = vrot.slane %v1994, 1
    %v1996 = vadd.f32 %v1994, %v1995
    %v1997 = vrcp.pop 8.0
    %v1998 = vmul.f32 %v1996, %v1997
    %vm1999 = vcmask 0
    %2000 = vst.msk [vmem:[#allocation7] sm:$0x1] %vm1999, %v1998
    // Predicated region
    $region58: #{custom_clip_forward.1} parent=1 // pred_check
      _
    $region59: #{custom_clip_forward.1} parent=1 // pred_check_branch
      %2002 = sbr.rel (0) target = $region61
    $region60: #{custom_clip_forward.1} parent=1 // pred_region
      %s2004 = ssub.s32 128, 128
      %2005 = vsyncadd [#allocation5], %s2004
      %s2007 = sshll.u32 [#allocation6], 4
      %s2008 = int_to_ptr.vmem [resolvable:$true] %s2007
      %2010 = dma.vmem_to_hbm [thread:$0]  %s2008, 128, %s13, [#allocation5]
    $region61: #{custom_clip_forward.1} parent=1 // pred_fallthru
      _
    // Predicated region
    $region62: #{custom_clip_forward.1} parent=1 // pred_check
      _
    $region63: #{custom_clip_forward.1} parent=1 // pred_check_branch
      %2012 = sbr.rel (0) target = $region65
    $region64: #{custom_clip_forward.1} parent=1 // pred_region
      %s2014 = ssub.s32 16, 16
      %2015 = vsyncadd [#allocation8], %s2014
      %s2017 = sshll.u32 [#allocation7], 4
      %s2018 = int_to_ptr.vmem [resolvable:$true] %s2017
      %2020 = dma.vmem_to_hbm [thread:$0]  %s2018, 16, %s14, [#allocation8]
    $region65: #{custom_clip_forward.1} parent=1 // pred_fallthru
      _
    // Predicated region
    $region66: #{custom_clip_forward.1} parent=1 // pred_check
      _
    $region67: #{custom_clip_forward.1} parent=1 // pred_check_branch
      %2022 = sbr.rel (0) target = $region69
    $region68: #{custom_clip_forward.1} parent=1 // pred_region
      %2023 = dma.done [#allocation5], 128
    $region69: #{custom_clip_forward.1} parent=1 // pred_fallthru
      _
    // Predicated region
    $region70: #{custom_clip_forward.1} parent=1 // pred_check
      _
    $region71: #{custom_clip_forward.1} parent=1 // pred_check_branch
      %2025 = sbr.rel (0) target = $region73
    $region72: #{custom_clip_forward.1} parent=1 // pred_region
      %2026 = dma.done [#allocation8], 16
    $region73: #{custom_clip_forward.1} parent=1 // pred_fallthru
      _
    %2027 = vsyncpa [#allocation4], 1
    %2028 = vsyncpa [#allocation5], 1
    %2029 = vsyncpa [#allocation8], 1

</llo_original>
